<compile_context>
chip_gen: v7x
topology: tpu7x:2x2x1
jax: 0.10.0
libtpu: 0.0.40
codegen_flags: <defaults>
</compile_context>

<pallas_src>
import functools

import jax
import jax.numpy as jnp
from jax.experimental import pallas as pl
from jax.experimental.pallas import tpu as pltpu


# ----------------------------------------------------------------------------
# Fused BiLM kernel: both LSTM-with-projection directions + vocab projection.
# ----------------------------------------------------------------------------
def _bilm_fused_kernel(x_ref, wi_ref, b_ref, whd_ref, wp_ref, lw_ref, lb_ref,
                       out_ref, hp_all, *, seq, bp, hid, cell):
    c = cell
    n = seq * bp

    # ---- one-time prologue (outside the serial recurrence) -----------------
    # Fold the per-direction state projection W_p into the recurrent weight and
    # into the vocab projection (mathematically identical forward).
    wp = wp_ref[...]                                   # [W_p^f | W_p^b] (c, 2*hid)
    wrec = jnp.dot(wp, whd_ref[...],
                   preferred_element_type=jnp.float32)  # (c, 8c)
    wp_rows = jnp.concatenate([wp[:, 0:hid], wp[:, hid:2 * hid]], axis=0)
    lwcat = jnp.dot(wp_rows, lw_ref[...],
                    preferred_element_type=jnp.float32)  # (2c, vocab_pad)

    # Hoisted, sequence-parallel input projection for BOTH directions, with the
    # biases folded in:
    #   pre[:, 0:4c]  = x @ W_i^fwd + b^fwd ; pre[:, 4c:8c] = x @ W_i^bwd + b^bwd
    pre = (jnp.dot(x_ref[...], wi_ref[...], preferred_element_type=jnp.float32)
           + b_ref[...])                                # (seq*bp, 8*cell)

    # Recurrent state (row-stacked: fwd rows 0:bp, bwd rows bp:2bp).
    hp = jnp.zeros((2 * bp, c), jnp.float32)  # pre-projection hidden o*tanh(cell)
    cc = jnp.zeros((2 * bp, c), jnp.float32)  # memory cell

    # Fully-unrolled serial time loop: fwd consumes time t, bwd consumes time
    # seq-1-t; one shared MXU matmul per step. All slices are 8-row aligned.
    for t in range(seq):
        rt = seq - 1 - t
        rec = jnp.dot(hp, wrec, preferred_element_type=jnp.float32)  # (2bp, 8c)
        gf = pre[t * bp:(t + 1) * bp, 0:4 * c] + rec[0:bp, 0:4 * c]
        gb = pre[rt * bp:(rt + 1) * bp, 4 * c:8 * c] + rec[bp:2 * bp, 4 * c:8 * c]
        g2 = jnp.concatenate([gf, gb], axis=0)          # (2*bp, 4*cell)

        i_g = jax.nn.sigmoid(g2[:, 0 * c:1 * c])
        f_g = jax.nn.sigmoid(g2[:, 1 * c:2 * c])
        g_g = jnp.tanh(g2[:, 2 * c:3 * c])
        o_g = jax.nn.sigmoid(g2[:, 3 * c:4 * c])

        cc = i_g * g_g + f_g * cc                       # (2*bp, cell)
        hp = o_g * jnp.tanh(cc)                         # (2*bp, cell)

        # Stash pre-projection h in (direction, time, batch) row order.
        hp_all[t * bp:(t + 1) * bp, :] = hp[0:bp, :]
        hp_all[n + rt * bp:n + (rt + 1) * bp, :] = hp[bp:2 * bp, :]

    # Fused vocab projection (state projection folded into lwcat); output last
    # dim padded to 128 lanes -> lane-dense unmasked stores.
    out_ref[0:n, :] = (jnp.dot(hp_all[0:n, :], lwcat[0:c, :],
                               preferred_element_type=jnp.float32)
                       + lb_ref[...])
    out_ref[n:2 * n, :] = (jnp.dot(hp_all[n:2 * n, :], lwcat[c:2 * c, :],
                                   preferred_element_type=jnp.float32)
                           + lb_ref[...])


def bilm_fused(x_flat, wi_cat, b_cat, whd, wp_cat, lw_pad, lb_pad,
               *, seq, bp, hid, cell, vocab_pad):
    n2 = 2 * seq * bp
    kernel = functools.partial(_bilm_fused_kernel, seq=seq, bp=bp,
                               hid=hid, cell=cell)
    full = lambda i: (0, 0)
    return pl.pallas_call(
        kernel,
        out_shape=jax.ShapeDtypeStruct((n2, vocab_pad), jnp.float32),
        grid_spec=pltpu.PrefetchScalarGridSpec(
            num_scalar_prefetch=0,
            grid=(1,),
            in_specs=[
                pl.BlockSpec(x_flat.shape, full),
                pl.BlockSpec(wi_cat.shape, full),
                pl.BlockSpec(b_cat.shape, full),
                pl.BlockSpec(whd.shape, full),
                pl.BlockSpec(wp_cat.shape, full),
                pl.BlockSpec(lw_pad.shape, full),
                pl.BlockSpec(lb_pad.shape, full),
            ],
            out_specs=pl.BlockSpec((n2, vocab_pad), full),
            scratch_shapes=[pltpu.VMEM((n2, cell), jnp.float32)],
        ),
        compiler_params=pltpu.CompilerParams(
            dimension_semantics=("arbitrary",)),
    )(x_flat, wi_cat, b_cat, whd, wp_cat, lw_pad, lb_pad)


# ----------------------------------------------------------------------------
# Model (eval-mode semantics: dropout / recurrent dropout are no-ops).
# ----------------------------------------------------------------------------
def init_params(key, vocab_size, emb_dim, hid_size):
    cell = hid_size  # BiLMEncoder(300, hid, hid, ...) -> cell_size == hid_size
    ks = jax.random.split(key, 10)
    s = 0.05
    params = {
        "embedding": jax.random.normal(ks[0], (vocab_size, emb_dim)) * s,
        # forward-direction LstmCellWithProjection
        "fwd_wi": jax.random.normal(ks[1], (emb_dim, 4 * cell)) * s,
        "fwd_wh": jax.random.normal(ks[2], (hid_size, 4 * cell)) * s,
        "fwd_b": jax.random.normal(ks[3], (1, 4 * cell)) * s,
        "fwd_wp": jax.random.normal(ks[4], (cell, hid_size)) * s,
        # backward-direction LstmCellWithProjection
        "bwd_wi": jax.random.normal(ks[5], (emb_dim, 4 * cell)) * s,
        "bwd_wh": jax.random.normal(ks[6], (hid_size, 4 * cell)) * s,
        "bwd_b": jax.random.normal(ks[7], (1, 4 * cell)) * s,
        "bwd_wp": jax.random.normal(ks[8], (cell, hid_size)) * s,
        # final Linear(hid_size, vocab_size), stored as (in, out)
        "lin_w": jax.random.normal(ks[9], (hid_size, vocab_size)) * s,
        "lin_b": jnp.zeros((1, vocab_size), jnp.float32),
    }
    return jax.tree_util.tree_map(lambda a: a.astype(jnp.float32), params)


@functools.partial(jax.jit, static_argnames=("hid_size",))
def model_forward(params, tokens, hid_size):
    batch, seq = tokens.shape
    hid = hid_size
    cell = hid
    vocab = params["lin_w"].shape[1]
    vocab_pad = ((vocab + 127) // 128) * 128
    bp = ((batch + 7) // 8) * 8          # pad batch to a sublane multiple

    # Embedding lookup (frozen nn.Embedding.from_pretrained) — glue, plain JAX.
    emb = jnp.take(params["embedding"], tokens.astype(jnp.int32), axis=0)
    # time-major, batch padded to bp, flattened to rows ordered (t, b).
    x = jnp.transpose(emb, (1, 0, 2))                       # (seq, batch, emb)
    x = jnp.pad(x, ((0, 0), (0, bp - batch), (0, 0)))       # (seq, bp, emb)
    x_flat = x.reshape(seq * bp, -1)

    # One-time weight packing (tiny XLA glue under jit):
    #   wi_cat : [W_i^fwd | W_i^bwd]              (emb, 8*cell)
    #   b_cat  : [b^fwd   | b^bwd]                (1, 8*cell)
    #   whd    : block-diag(W_h^fwd, W_h^bwd)     (2*hid, 8*cell)
    #   wp_cat : [W_p^fwd | W_p^bwd]              (cell, 2*hid)
    wi_cat = jnp.concatenate([params["fwd_wi"], params["bwd_wi"]], axis=1)
    b_cat = jnp.concatenate([params["fwd_b"], params["bwd_b"]], axis=1)
    z = jnp.zeros((hid, 4 * cell), jnp.float32)
    whd = jnp.concatenate([
        jnp.concatenate([params["fwd_wh"], z], axis=1),
        jnp.concatenate([z, params["bwd_wh"]], axis=1)], axis=0)
    wp_cat = jnp.concatenate([params["fwd_wp"], params["bwd_wp"]], axis=1)
    # Pad the vocab projection to 128 lanes for lane-dense output stores.
    lw_pad = jnp.pad(params["lin_w"], ((0, 0), (0, vocab_pad - vocab)))
    lb_pad = jnp.pad(params["lin_b"], ((0, 0), (0, vocab_pad - vocab)))

    logits_pad = bilm_fused(x_flat, wi_cat, b_cat, whd, wp_cat, lw_pad, lb_pad,
                            seq=seq, bp=bp, hid=hid, cell=cell,
                            vocab_pad=vocab_pad)

    # Kernel rows are ordered (direction, time, padded-batch); Model.forward
    # wants (direction, batch, time) with directions concatenated on dim 0.
    logits = logits_pad[:, :vocab].reshape(2, seq, bp, vocab)[:, :, :batch, :]
    logits = jnp.transpose(logits, (0, 2, 1, 3)).reshape(2 * batch * seq, vocab)
    return logits


if __name__ == "__main__":
    # Small, consistent configuration (num_lstm_layers=1).
    # TODO(synk): only num_lstm_layers == 1 is implemented; mask is all-ones
    #             (matches Model.forward's torch.ones mask), so length-aware
    #             backward masking for padded batches is omitted.
    options = dict(vocab_size=64, hid_size=32, max_seq_len=8,
                   num_lstm_layers=1, dropout=0.0)
    emb_dim = 300
    batch = 2

    key = jax.random.PRNGKey(0)
    pkey, tkey = jax.random.split(key)
    params = init_params(pkey, options["vocab_size"], emb_dim,
                         options["hid_size"])
    tokens = jax.random.randint(
        tkey, (batch, options["max_seq_len"]), 0, options["vocab_size"],
        dtype=jnp.int32)

    logits = model_forward(params, tokens, options["hid_size"])
    jax.block_until_ready(logits)

    expected = (2 * batch * options["max_seq_len"], options["vocab_size"])
    assert logits.shape == expected, (logits.shape, expected)
    assert bool(jnp.all(jnp.isfinite(logits)))
    print("KERNEL_OK")
</pallas_src>

<mosaic_0001>
module attributes {stable_mosaic.version = 11 : i64} {
  func.func @_bilm_fused_kernel(%arg0: i32, %arg1: memref<64x300xf32, #tpu.memory_space<vmem>>, %arg2: memref<300x256xf32, #tpu.memory_space<vmem>>, %arg3: memref<1x256xf32, #tpu.memory_space<vmem>>, %arg4: memref<64x256xf32, #tpu.memory_space<vmem>>, %arg5: memref<32x64xf32, #tpu.memory_space<vmem>>, %arg6: memref<32x128xf32, #tpu.memory_space<vmem>>, %arg7: memref<1x128xf32, #tpu.memory_space<vmem>>, %arg8: memref<128x128xf32, #tpu.memory_space<vmem>>, %arg9: memref<128x32xf32, #tpu.memory_space<vmem>>) attributes {dimension_semantics = [#tpu.dimension_semantics<arbitrary>], iteration_bounds = array<i64: 1>, scalar_prefetch = 0 : i64, scratch_operands = 1 : i64, tpu.core_type = #tpu.core_type<tc>, window_params = [{pipeline_mode = #tpu.pipeline_mode<synchronous>, transform_indices = @transform_0, window_bounds = array<i64: 64, 300>}, {pipeline_mode = #tpu.pipeline_mode<synchronous>, transform_indices = @transform_1, window_bounds = array<i64: 300, 256>}, {pipeline_mode = #tpu.pipeline_mode<synchronous>, transform_indices = @transform_2, window_bounds = array<i64: 1, 256>}, {pipeline_mode = #tpu.pipeline_mode<synchronous>, transform_indices = @transform_3, window_bounds = array<i64: 64, 256>}, {pipeline_mode = #tpu.pipeline_mode<synchronous>, transform_indices = @transform_4, window_bounds = array<i64: 32, 64>}, {pipeline_mode = #tpu.pipeline_mode<synchronous>, transform_indices = @transform_5, window_bounds = array<i64: 32, 128>}, {pipeline_mode = #tpu.pipeline_mode<synchronous>, transform_indices = @transform_6, window_bounds = array<i64: 1, 128>}, {pipeline_mode = #tpu.pipeline_mode<synchronous>, transform_indices = @transform_7, window_bounds = array<i64: 128, 128>}]} {
    %c0 = arith.constant 0 : index
    %c0_0 = arith.constant 0 : index
    %0 = vector.load %arg5[%c0, %c0_0] : memref<32x64xf32, #tpu.memory_space<vmem>>, vector<32x64xf32>
    %c0_1 = arith.constant 0 : index
    %c0_2 = arith.constant 0 : index
    %1 = vector.load %arg4[%c0_1, %c0_2] : memref<64x256xf32, #tpu.memory_space<vmem>>, vector<64x256xf32>
    %cst = arith.constant dense<0.000000e+00> : vector<32x256xf32>
    %2 = tpu.matmul %0, %1, %cst {dimension_numbers = #tpu.dot_dimension_numbers<[1], [0], [0], [1], [0, 0, 1, 1], [], []>} : vector<32x64xf32>, vector<64x256xf32>, vector<32x256xf32> -> vector<32x256xf32>
    %3 = vector.extract_strided_slice %0 {offsets = [0, 0], sizes = [32, 32], strides = [1, 1]} : vector<32x64xf32> to vector<32x32xf32>
    %4 = vector.extract_strided_slice %0 {offsets = [0, 32], sizes = [32, 32], strides = [1, 1]} : vector<32x64xf32> to vector<32x32xf32>
    %5 = tpu.concatenate %3, %4 in 0 : vector<32x32xf32>, vector<32x32xf32> -> vector<64x32xf32>
    %c0_3 = arith.constant 0 : index
    %c0_4 = arith.constant 0 : index
    %6 = vector.load %arg6[%c0_3, %c0_4] : memref<32x128xf32, #tpu.memory_space<vmem>>, vector<32x128xf32>
    %cst_5 = arith.constant dense<0.000000e+00> : vector<64x128xf32>
    %7 = tpu.matmul %5, %6, %cst_5 {dimension_numbers = #tpu.dot_dimension_numbers<[1], [0], [0], [1], [0, 0, 1, 1], [], []>} : vector<64x32xf32>, vector<32x128xf32>, vector<64x128xf32> -> vector<64x128xf32>
    %c0_6 = arith.constant 0 : index
    %c0_7 = arith.constant 0 : index
    %8 = vector.load %arg1[%c0_6, %c0_7] : memref<64x300xf32, #tpu.memory_space<vmem>>, vector<64x300xf32>
    %c0_8 = arith.constant 0 : index
    %c0_9 = arith.constant 0 : index
    %9 = vector.load %arg2[%c0_8, %c0_9] : memref<300x256xf32, #tpu.memory_space<vmem>>, vector<300x256xf32>
    %cst_10 = arith.constant dense<0.000000e+00> : vector<64x256xf32>
    %10 = tpu.matmul %8, %9, %cst_10 {dimension_numbers = #tpu.dot_dimension_numbers<[1], [0], [0], [1], [0, 0, 1, 1], [], []>} : vector<64x300xf32>, vector<300x256xf32>, vector<64x256xf32> -> vector<64x256xf32>
    %c0_11 = arith.constant 0 : index
    %c0_12 = arith.constant 0 : index
    %11 = vector.load %arg3[%c0_11, %c0_12] : memref<1x256xf32, #tpu.memory_space<vmem>>, vector<1x256xf32>
    %12 = vector.broadcast %11 : vector<1x256xf32> to vector<64x256xf32>
    %13 = arith.addf %10, %12 : vector<64x256xf32>
    %cst_13 = arith.constant 0.000000e+00 : f32
    %14 = vector.broadcast %cst_13 : f32 to vector<16x32xf32>
    %cst_14 = arith.constant 0.000000e+00 : f32
    %15 = vector.broadcast %cst_14 : f32 to vector<16x32xf32>
    %cst_15 = arith.constant dense<0.000000e+00> : vector<16x256xf32>
    %16 = tpu.matmul %14, %2, %cst_15 {dimension_numbers = #tpu.dot_dimension_numbers<[1], [0], [0], [1], [0, 0, 1, 1], [], []>} : vector<16x32xf32>, vector<32x256xf32>, vector<16x256xf32> -> vector<16x256xf32>
    %17 = vector.extract_strided_slice %13 {offsets = [0, 0], sizes = [8, 128], strides = [1, 1]} : vector<64x256xf32> to vector<8x128xf32>
    %18 = vector.extract_strided_slice %16 {offsets = [0, 0], sizes = [8, 128], strides = [1, 1]} : vector<16x256xf32> to vector<8x128xf32>
    %19 = arith.addf %17, %18 : vector<8x128xf32>
    %20 = vector.extract_strided_slice %13 {offsets = [56, 128], sizes = [8, 128], strides = [1, 1]} : vector<64x256xf32> to vector<8x128xf32>
    %21 = vector.extract_strided_slice %16 {offsets = [8, 128], sizes = [8, 128], strides = [1, 1]} : vector<16x256xf32> to vector<8x128xf32>
    %22 = arith.addf %20, %21 : vector<8x128xf32>
    %23 = tpu.concatenate %19, %22 in 0 : vector<8x128xf32>, vector<8x128xf32> -> vector<16x128xf32>
    %24 = vector.extract_strided_slice %23 {offsets = [0, 0], sizes = [16, 32], strides = [1, 1]} : vector<16x128xf32> to vector<16x32xf32>
    %25 = arith.negf %24 : vector<16x32xf32>
    %26 = math.exp %25 : vector<16x32xf32>
    %cst_16 = arith.constant 1.000000e+00 : f32
    %27 = vector.broadcast %cst_16 : f32 to vector<16x32xf32>
    %28 = arith.addf %27, %26 : vector<16x32xf32>
    %29 = arith.divf %27, %28 : vector<16x32xf32>
    %30 = vector.extract_strided_slice %23 {offsets = [0, 32], sizes = [16, 32], strides = [1, 1]} : vector<16x128xf32> to vector<16x32xf32>
    %31 = arith.negf %30 : vector<16x32xf32>
    %32 = math.exp %31 : vector<16x32xf32>
    %cst_17 = arith.constant 1.000000e+00 : f32
    %33 = vector.broadcast %cst_17 : f32 to vector<16x32xf32>
    %34 = arith.addf %33, %32 : vector<16x32xf32>
    %35 = arith.divf %33, %34 : vector<16x32xf32>
    %36 = vector.extract_strided_slice %23 {offsets = [0, 64], sizes = [16, 32], strides = [1, 1]} : vector<16x128xf32> to vector<16x32xf32>
    %37 = math.tanh %36 : vector<16x32xf32>
    %38 = vector.extract_strided_slice %23 {offsets = [0, 96], sizes = [16, 32], strides = [1, 1]} : vector<16x128xf32> to vector<16x32xf32>
    %39 = arith.negf %38 : vector<16x32xf32>
    %40 = math.exp %39 : vector<16x32xf32>
    %cst_18 = arith.constant 1.000000e+00 : f32
    %41 = vector.broadcast %cst_18 : f32 to vector<16x32xf32>
    %42 = arith.addf %41, %40 : vector<16x32xf32>
    %43 = arith.divf %41, %42 : vector<16x32xf32>
    %44 = arith.mulf %29, %37 : vector<16x32xf32>
    %45 = arith.mulf %35, %15 : vector<16x32xf32>
    %46 = arith.addf %44, %45 : vector<16x32xf32>
    %47 = math.tanh %46 : vector<16x32xf32>
    %48 = arith.mulf %43, %47 : vector<16x32xf32>
    %49 = vector.extract_strided_slice %48 {offsets = [0, 0], sizes = [8, 32], strides = [1, 1]} : vector<16x32xf32> to vector<8x32xf32>
    %c0_19 = arith.constant 0 : index
    %c0_20 = arith.constant 0 : index
    %50 = vector.load %arg9[%c0_19, %c0_20] : memref<128x32xf32, #tpu.memory_space<vmem>>, vector<8x32xf32>
    tpu.vector_store %arg9[%c0_19, %c0_20], %49 {strides = array<i32>} : memref<128x32xf32, #tpu.memory_space<vmem>>, vector<8x32xf32>,
    %51 = vector.extract_strided_slice %48 {offsets = [8, 0], sizes = [8, 32], strides = [1, 1]} : vector<16x32xf32> to vector<8x32xf32>
    %c120 = arith.constant 120 : index
    %c0_21 = arith.constant 0 : index
    %52 = vector.load %arg9[%c120, %c0_21] : memref<128x32xf32, #tpu.memory_space<vmem>>, vector<8x32xf32>
    tpu.vector_store %arg9[%c120, %c0_21], %51 {strides = array<i32>} : memref<128x32xf32, #tpu.memory_space<vmem>>, vector<8x32xf32>,
    %cst_22 = arith.constant dense<0.000000e+00> : vector<16x256xf32>
    %53 = tpu.matmul %48, %2, %cst_22 {dimension_numbers = #tpu.dot_dimension_numbers<[1], [0], [0], [1], [0, 0, 1, 1], [], []>} : vector<16x32xf32>, vector<32x256xf32>, vector<16x256xf32> -> vector<16x256xf32>
    %54 = vector.extract_strided_slice %13 {offsets = [8, 0], sizes = [8, 128], strides = [1, 1]} : vector<64x256xf32> to vector<8x128xf32>
    %55 = vector.extract_strided_slice %53 {offsets = [0, 0], sizes = [8, 128], strides = [1, 1]} : vector<16x256xf32> to vector<8x128xf32>
    %56 = arith.addf %54, %55 : vector<8x128xf32>
    %57 = vector.extract_strided_slice %13 {offsets = [48, 128], sizes = [8, 128], strides = [1, 1]} : vector<64x256xf32> to vector<8x128xf32>
    %58 = vector.extract_strided_slice %53 {offsets = [8, 128], sizes = [8, 128], strides = [1, 1]} : vector<16x256xf32> to vector<8x128xf32>
    %59 = arith.addf %57, %58 : vector<8x128xf32>
    %60 = tpu.concatenate %56, %59 in 0 : vector<8x128xf32>, vector<8x128xf32> -> vector<16x128xf32>
    %61 = vector.extract_strided_slice %60 {offsets = [0, 0], sizes = [16, 32], strides = [1, 1]} : vector<16x128xf32> to vector<16x32xf32>
    %62 = arith.negf %61 : vector<16x32xf32>
    %63 = math.exp %62 : vector<16x32xf32>
    %cst_23 = arith.constant 1.000000e+00 : f32
    %64 = vector.broadcast %cst_23 : f32 to vector<16x32xf32>
    %65 = arith.addf %64, %63 : vector<16x32xf32>
    %66 = arith.divf %64, %65 : vector<16x32xf32>
    %67 = vector.extract_strided_slice %60 {offsets = [0, 32], sizes = [16, 32], strides = [1, 1]} : vector<16x128xf32> to vector<16x32xf32>
    %68 = arith.negf %67 : vector<16x32xf32>
    %69 = math.exp %68 : vector<16x32xf32>
    %cst_24 = arith.constant 1.000000e+00 : f32
    %70 = vector.broadcast %cst_24 : f32 to vector<16x32xf32>
    %71 = arith.addf %70, %69 : vector<16x32xf32>
    %72 = arith.divf %70, %71 : vector<16x32xf32>
    %73 = vector.extract_strided_slice %60 {offsets = [0, 64], sizes = [16, 32], strides = [1, 1]} : vector<16x128xf32> to vector<16x32xf32>
    %74 = math.tanh %73 : vector<16x32xf32>
    %75 = vector.extract_strided_slice %60 {offsets = [0, 96], sizes = [16, 32], strides = [1, 1]} : vector<16x128xf32> to vector<16x32xf32>
    %76 = arith.negf %75 : vector<16x32xf32>
    %77 = math.exp %76 : vector<16x32xf32>
    %cst_25 = arith.constant 1.000000e+00 : f32
    %78 = vector.broadcast %cst_25 : f32 to vector<16x32xf32>
    %79 = arith.addf %78, %77 : vector<16x32xf32>
    %80 = arith.divf %78, %79 : vector<16x32xf32>
    %81 = arith.mulf %66, %74 : vector<16x32xf32>
    %82 = arith.mulf %72, %46 : vector<16x32xf32>
    %83 = arith.addf %81, %82 : vector<16x32xf32>
    %84 = math.tanh %83 : vector<16x32xf32>
    %85 = arith.mulf %80, %84 : vector<16x32xf32>
    %86 = vector.extract_strided_slice %85 {offsets = [0, 0], sizes = [8, 32], strides = [1, 1]} : vector<16x32xf32> to vector<8x32xf32>
    %c8 = arith.constant 8 : index
    %c0_26 = arith.constant 0 : index
    %87 = vector.load %arg9[%c8, %c0_26] : memref<128x32xf32, #tpu.memory_space<vmem>>, vector<8x32xf32>
    tpu.vector_store %arg9[%c8, %c0_26], %86 {strides = array<i32>} : memref<128x32xf32, #tpu.memory_space<vmem>>, vector<8x32xf32>,
    %88 = vector.extract_strided_slice %85 {offsets = [8, 0], sizes = [8, 32], strides = [1, 1]} : vector<16x32xf32> to vector<8x32xf32>
    %c112 = arith.constant 112 : index
    %c0_27 = arith.constant 0 : index
    %89 = vector.load %arg9[%c112, %c0_27] : memref<128x32xf32, #tpu.memory_space<vmem>>, vector<8x32xf32>
    tpu.vector_store %arg9[%c112, %c0_27], %88 {strides = array<i32>} : memref<128x32xf32, #tpu.memory_space<vmem>>, vector<8x32xf32>,
    %cst_28 = arith.constant dense<0.000000e+00> : vector<16x256xf32>
    %90 = tpu.matmul %85, %2, %cst_28 {dimension_numbers = #tpu.dot_dimension_numbers<[1], [0], [0], [1], [0, 0, 1, 1], [], []>} : vector<16x32xf32>, vector<32x256xf32>, vector<16x256xf32> -> vector<16x256xf32>
    %91 = vector.extract_strided_slice %13 {offsets = [16, 0], sizes = [8, 128], strides = [1, 1]} : vector<64x256xf32> to vector<8x128xf32>
    %92 = vector.extract_strided_slice %90 {offsets = [0, 0], sizes = [8, 128], strides = [1, 1]} : vector<16x256xf32> to vector<8x128xf32>
    %93 = arith.addf %91, %92 : vector<8x128xf32>
    %94 = vector.extract_strided_slice %13 {offsets = [40, 128], sizes = [8, 128], strides = [1, 1]} : vector<64x256xf32> to vector<8x128xf32>
    %95 = vector.extract_strided_slice %90 {offsets = [8, 128], sizes = [8, 128], strides = [1, 1]} : vector<16x256xf32> to vector<8x128xf32>
    %96 = arith.addf %94, %95 : vector<8x128xf32>
    %97 = tpu.concatenate %93, %96 in 0 : vector<8x128xf32>, vector<8x128xf32> -> vector<16x128xf32>
    %98 = vector.extract_strided_slice %97 {offsets = [0, 0], sizes = [16, 32], strides = [1, 1]} : vector<16x128xf32> to vector<16x32xf32>
    %99 = arith.negf %98 : vector<16x32xf32>
    %100 = math.exp %99 : vector<16x32xf32>
    %cst_29 = arith.constant 1.000000e+00 : f32
    %101 = vector.broadcast %cst_29 : f32 to vector<16x32xf32>
    %102 = arith.addf %101, %100 : vector<16x32xf32>
    %103 = arith.divf %101, %102 : vector<16x32xf32>
    %104 = vector.extract_strided_slice %97 {offsets = [0, 32], sizes = [16, 32], strides = [1, 1]} : vector<16x128xf32> to vector<16x32xf32>
    %105 = arith.negf %104 : vector<16x32xf32>
    %106 = math.exp %105 : vector<16x32xf32>
    %cst_30 = arith.constant 1.000000e+00 : f32
    %107 = vector.broadcast %cst_30 : f32 to vector<16x32xf32>
    %108 = arith.addf %107, %106 : vector<16x32xf32>
    %109 = arith.divf %107, %108 : vector<16x32xf32>
    %110 = vector.extract_strided_slice %97 {offsets = [0, 64], sizes = [16, 32], strides = [1, 1]} : vector<16x128xf32> to vector<16x32xf32>
    %111 = math.tanh %110 : vector<16x32xf32>
    %112 = vector.extract_strided_slice %97 {offsets = [0, 96], sizes = [16, 32], strides = [1, 1]} : vector<16x128xf32> to vector<16x32xf32>
    %113 = arith.negf %112 : vector<16x32xf32>
    %114 = math.exp %113 : vector<16x32xf32>
    %cst_31 = arith.constant 1.000000e+00 : f32
    %115 = vector.broadcast %cst_31 : f32 to vector<16x32xf32>
    %116 = arith.addf %115, %114 : vector<16x32xf32>
    %117 = arith.divf %115, %116 : vector<16x32xf32>
    %118 = arith.mulf %103, %111 : vector<16x32xf32>
    %119 = arith.mulf %109, %83 : vector<16x32xf32>
    %120 = arith.addf %118, %119 : vector<16x32xf32>
    %121 = math.tanh %120 : vector<16x32xf32>
    %122 = arith.mulf %117, %121 : vector<16x32xf32>
    %123 = vector.extract_strided_slice %122 {offsets = [0, 0], sizes = [8, 32], strides = [1, 1]} : vector<16x32xf32> to vector<8x32xf32>
    %c16 = arith.constant 16 : index
    %c0_32 = arith.constant 0 : index
    %124 = vector.load %arg9[%c16, %c0_32] : memref<128x32xf32, #tpu.memory_space<vmem>>, vector<8x32xf32>
    tpu.vector_store %arg9[%c16, %c0_32], %123 {strides = array<i32>} : memref<128x32xf32, #tpu.memory_space<vmem>>, vector<8x32xf32>,
    %125 = vector.extract_strided_slice %122 {offsets = [8, 0], sizes = [8, 32], strides = [1, 1]} : vector<16x32xf32> to vector<8x32xf32>
    %c104 = arith.constant 104 : index
    %c0_33 = arith.constant 0 : index
    %126 = vector.load %arg9[%c104, %c0_33] : memref<128x32xf32, #tpu.memory_space<vmem>>, vector<8x32xf32>
    tpu.vector_store %arg9[%c104, %c0_33], %125 {strides = array<i32>} : memref<128x32xf32, #tpu.memory_space<vmem>>, vector<8x32xf32>,
    %cst_34 = arith.constant dense<0.000000e+00> : vector<16x256xf32>
    %127 = tpu.matmul %122, %2, %cst_34 {dimension_numbers = #tpu.dot_dimension_numbers<[1], [0], [0], [1], [0, 0, 1, 1], [], []>} : vector<16x32xf32>, vector<32x256xf32>, vector<16x256xf32> -> vector<16x256xf32>
    %128 = vector.extract_strided_slice %13 {offsets = [24, 0], sizes = [8, 128], strides = [1, 1]} : vector<64x256xf32> to vector<8x128xf32>
    %129 = vector.extract_strided_slice %127 {offsets = [0, 0], sizes = [8, 128], strides = [1, 1]} : vector<16x256xf32> to vector<8x128xf32>
    %130 = arith.addf %128, %129 : vector<8x128xf32>
    %131 = vector.extract_strided_slice %13 {offsets = [32, 128], sizes = [8, 128], strides = [1, 1]} : vector<64x256xf32> to vector<8x128xf32>
    %132 = vector.extract_strided_slice %127 {offsets = [8, 128], sizes = [8, 128], strides = [1, 1]} : vector<16x256xf32> to vector<8x128xf32>
    %133 = arith.addf %131, %132 : vector<8x128xf32>
    %134 = tpu.concatenate %130, %133 in 0 : vector<8x128xf32>, vector<8x128xf32> -> vector<16x128xf32>
    %135 = vector.extract_strided_slice %134 {offsets = [0, 0], sizes = [16, 32], strides = [1, 1]} : vector<16x128xf32> to vector<16x32xf32>
    %136 = arith.negf %135 : vector<16x32xf32>
    %137 = math.exp %136 : vector<16x32xf32>
    %cst_35 = arith.constant 1.000000e+00 : f32
    %138 = vector.broadcast %cst_35 : f32 to vector<16x32xf32>
    %139 = arith.addf %138, %137 : vector<16x32xf32>
    %140 = arith.divf %138, %139 : vector<16x32xf32>
    %141 = vector.extract_strided_slice %134 {offsets = [0, 32], sizes = [16, 32], strides = [1, 1]} : vector<16x128xf32> to vector<16x32xf32>
    %142 = arith.negf %141 : vector<16x32xf32>
    %143 = math.exp %142 : vector<16x32xf32>
    %cst_36 = arith.constant 1.000000e+00 : f32
    %144 = vector.broadcast %cst_36 : f32 to vector<16x32xf32>
    %145 = arith.addf %144, %143 : vector<16x32xf32>
    %146 = arith.divf %144, %145 : vector<16x32xf32>
    %147 = vector.extract_strided_slice %134 {offsets = [0, 64], sizes = [16, 32], strides = [1, 1]} : vector<16x128xf32> to vector<16x32xf32>
    %148 = math.tanh %147 : vector<16x32xf32>
    %149 = vector.extract_strided_slice %134 {offsets = [0, 96], sizes = [16, 32], strides = [1, 1]} : vector<16x128xf32> to vector<16x32xf32>
    %150 = arith.negf %149 : vector<16x32xf32>
    %151 = math.exp %150 : vector<16x32xf32>
    %cst_37 = arith.constant 1.000000e+00 : f32
    %152 = vector.broadcast %cst_37 : f32 to vector<16x32xf32>
    %153 = arith.addf %152, %151 : vector<16x32xf32>
    %154 = arith.divf %152, %153 : vector<16x32xf32>
    %155 = arith.mulf %140, %148 : vector<16x32xf32>
    %156 = arith.mulf %146, %120 : vector<16x32xf32>
    %157 = arith.addf %155, %156 : vector<16x32xf32>
    %158 = math.tanh %157 : vector<16x32xf32>
    %159 = arith.mulf %154, %158 : vector<16x32xf32>
    %160 = vector.extract_strided_slice %159 {offsets = [0, 0], sizes = [8, 32], strides = [1, 1]} : vector<16x32xf32> to vector<8x32xf32>
    %c24 = arith.constant 24 : index
    %c0_38 = arith.constant 0 : index
    %161 = vector.load %arg9[%c24, %c0_38] : memref<128x32xf32, #tpu.memory_space<vmem>>, vector<8x32xf32>
    tpu.vector_store %arg9[%c24, %c0_38], %160 {strides = array<i32>} : memref<128x32xf32, #tpu.memory_space<vmem>>, vector<8x32xf32>,
    %162 = vector.extract_strided_slice %159 {offsets = [8, 0], sizes = [8, 32], strides = [1, 1]} : vector<16x32xf32> to vector<8x32xf32>
    %c96 = arith.constant 96 : index
    %c0_39 = arith.constant 0 : index
    %163 = vector.load %arg9[%c96, %c0_39] : memref<128x32xf32, #tpu.memory_space<vmem>>, vector<8x32xf32>
    tpu.vector_store %arg9[%c96, %c0_39], %162 {strides = array<i32>} : memref<128x32xf32, #tpu.memory_space<vmem>>, vector<8x32xf32>,
    %cst_40 = arith.constant dense<0.000000e+00> : vector<16x256xf32>
    %164 = tpu.matmul %159, %2, %cst_40 {dimension_numbers = #tpu.dot_dimension_numbers<[1], [0], [0], [1], [0, 0, 1, 1], [], []>} : vector<16x32xf32>, vector<32x256xf32>, vector<16x256xf32> -> vector<16x256xf32>
    %165 = vector.extract_strided_slice %13 {offsets = [32, 0], sizes = [8, 128], strides = [1, 1]} : vector<64x256xf32> to vector<8x128xf32>
    %166 = vector.extract_strided_slice %164 {offsets = [0, 0], sizes = [8, 128], strides = [1, 1]} : vector<16x256xf32> to vector<8x128xf32>
    %167 = arith.addf %165, %166 : vector<8x128xf32>
    %168 = vector.extract_strided_slice %13 {offsets = [24, 128], sizes = [8, 128], strides = [1, 1]} : vector<64x256xf32> to vector<8x128xf32>
    %169 = vector.extract_strided_slice %164 {offsets = [8, 128], sizes = [8, 128], strides = [1, 1]} : vector<16x256xf32> to vector<8x128xf32>
    %170 = arith.addf %168, %169 : vector<8x128xf32>
    %171 = tpu.concatenate %167, %170 in 0 : vector<8x128xf32>, vector<8x128xf32> -> vector<16x128xf32>
    %172 = vector.extract_strided_slice %171 {offsets = [0, 0], sizes = [16, 32], strides = [1, 1]} : vector<16x128xf32> to vector<16x32xf32>
    %173 = arith.negf %172 : vector<16x32xf32>
    %174 = math.exp %173 : vector<16x32xf32>
    %cst_41 = arith.constant 1.000000e+00 : f32
    %175 = vector.broadcast %cst_41 : f32 to vector<16x32xf32>
    %176 = arith.addf %175, %174 : vector<16x32xf32>
    %177 = arith.divf %175, %176 : vector<16x32xf32>
    %178 = vector.extract_strided_slice %171 {offsets = [0, 32], sizes = [16, 32], strides = [1, 1]} : vector<16x128xf32> to vector<16x32xf32>
    %179 = arith.negf %178 : vector<16x32xf32>
    %180 = math.exp %179 : vector<16x32xf32>
    %cst_42 = arith.constant 1.000000e+00 : f32
    %181 = vector.broadcast %cst_42 : f32 to vector<16x32xf32>
    %182 = arith.addf %181, %180 : vector<16x32xf32>
    %183 = arith.divf %181, %182 : vector<16x32xf32>
    %184 = vector.extract_strided_slice %171 {offsets = [0, 64], sizes = [16, 32], strides = [1, 1]} : vector<16x128xf32> to vector<16x32xf32>
    %185 = math.tanh %184 : vector<16x32xf32>
    %186 = vector.extract_strided_slice %171 {offsets = [0, 96], sizes = [16, 32], strides = [1, 1]} : vector<16x128xf32> to vector<16x32xf32>
    %187 = arith.negf %186 : vector<16x32xf32>
    %188 = math.exp %187 : vector<16x32xf32>
    %cst_43 = arith.constant 1.000000e+00 : f32
    %189 = vector.broadcast %cst_43 : f32 to vector<16x32xf32>
    %190 = arith.addf %189, %188 : vector<16x32xf32>
    %191 = arith.divf %189, %190 : vector<16x32xf32>
    %192 = arith.mulf %177, %185 : vector<16x32xf32>
    %193 = arith.mulf %183, %157 : vector<16x32xf32>
    %194 = arith.addf %192, %193 : vector<16x32xf32>
    %195 = math.tanh %194 : vector<16x32xf32>
    %196 = arith.mulf %191, %195 : vector<16x32xf32>
    %197 = vector.extract_strided_slice %196 {offsets = [0, 0], sizes = [8, 32], strides = [1, 1]} : vector<16x32xf32> to vector<8x32xf32>
    %c32 = arith.constant 32 : index
    %c0_44 = arith.constant 0 : index
    %198 = vector.load %arg9[%c32, %c0_44] : memref<128x32xf32, #tpu.memory_space<vmem>>, vector<8x32xf32>
    tpu.vector_store %arg9[%c32, %c0_44], %197 {strides = array<i32>} : memref<128x32xf32, #tpu.memory_space<vmem>>, vector<8x32xf32>,
    %199 = vector.extract_strided_slice %196 {offsets = [8, 0], sizes = [8, 32], strides = [1, 1]} : vector<16x32xf32> to vector<8x32xf32>
    %c88 = arith.constant 88 : index
    %c0_45 = arith.constant 0 : index
    %200 = vector.load %arg9[%c88, %c0_45] : memref<128x32xf32, #tpu.memory_space<vmem>>, vector<8x32xf32>
    tpu.vector_store %arg9[%c88, %c0_45], %199 {strides = array<i32>} : memref<128x32xf32, #tpu.memory_space<vmem>>, vector<8x32xf32>,
    %cst_46 = arith.constant dense<0.000000e+00> : vector<16x256xf32>
    %201 = tpu.matmul %196, %2, %cst_46 {dimension_numbers = #tpu.dot_dimension_numbers<[1], [0], [0], [1], [0, 0, 1, 1], [], []>} : vector<16x32xf32>, vector<32x256xf32>, vector<16x256xf32> -> vector<16x256xf32>
    %202 = vector.extract_strided_slice %13 {offsets = [40, 0], sizes = [8, 128], strides = [1, 1]} : vector<64x256xf32> to vector<8x128xf32>
    %203 = vector.extract_strided_slice %201 {offsets = [0, 0], sizes = [8, 128], strides = [1, 1]} : vector<16x256xf32> to vector<8x128xf32>
    %204 = arith.addf %202, %203 : vector<8x128xf32>
    %205 = vector.extract_strided_slice %13 {offsets = [16, 128], sizes = [8, 128], strides = [1, 1]} : vector<64x256xf32> to vector<8x128xf32>
    %206 = vector.extract_strided_slice %201 {offsets = [8, 128], sizes = [8, 128], strides = [1, 1]} : vector<16x256xf32> to vector<8x128xf32>
    %207 = arith.addf %205, %206 : vector<8x128xf32>
    %208 = tpu.concatenate %204, %207 in 0 : vector<8x128xf32>, vector<8x128xf32> -> vector<16x128xf32>
    %209 = vector.extract_strided_slice %208 {offsets = [0, 0], sizes = [16, 32], strides = [1, 1]} : vector<16x128xf32> to vector<16x32xf32>
    %210 = arith.negf %209 : vector<16x32xf32>
    %211 = math.exp %210 : vector<16x32xf32>
    %cst_47 = arith.constant 1.000000e+00 : f32
    %212 = vector.broadcast %cst_47 : f32 to vector<16x32xf32>
    %213 = arith.addf %212, %211 : vector<16x32xf32>
    %214 = arith.divf %212, %213 : vector<16x32xf32>
    %215 = vector.extract_strided_slice %208 {offsets = [0, 32], sizes = [16, 32], strides = [1, 1]} : vector<16x128xf32> to vector<16x32xf32>
    %216 = arith.negf %215 : vector<16x32xf32>
    %217 = math.exp %216 : vector<16x32xf32>
    %cst_48 = arith.constant 1.000000e+00 : f32
    %218 = vector.broadcast %cst_48 : f32 to vector<16x32xf32>
    %219 = arith.addf %218, %217 : vector<16x32xf32>
    %220 = arith.divf %218, %219 : vector<16x32xf32>
    %221 = vector.extract_strided_slice %208 {offsets = [0, 64], sizes = [16, 32], strides = [1, 1]} : vector<16x128xf32> to vector<16x32xf32>
    %222 = math.tanh %221 : vector<16x32xf32>
    %223 = vector.extract_strided_slice %208 {offsets = [0, 96], sizes = [16, 32], strides = [1, 1]} : vector<16x128xf32> to vector<16x32xf32>
    %224 = arith.negf %223 : vector<16x32xf32>
    %225 = math.exp %224 : vector<16x32xf32>
    %cst_49 = arith.constant 1.000000e+00 : f32
    %226 = vector.broadcast %cst_49 : f32 to vector<16x32xf32>
    %227 = arith.addf %226, %225 : vector<16x32xf32>
    %228 = arith.divf %226, %227 : vector<16x32xf32>
    %229 = arith.mulf %214, %222 : vector<16x32xf32>
    %230 = arith.mulf %220, %194 : vector<16x32xf32>
    %231 = arith.addf %229, %230 : vector<16x32xf32>
    %232 = math.tanh %231 : vector<16x32xf32>
    %233 = arith.mulf %228, %232 : vector<16x32xf32>
    %234 = vector.extract_strided_slice %233 {offsets = [0, 0], sizes = [8, 32], strides = [1, 1]} : vector<16x32xf32> to vector<8x32xf32>
    %c40 = arith.constant 40 : index
    %c0_50 = arith.constant 0 : index
    %235 = vector.load %arg9[%c40, %c0_50] : memref<128x32xf32, #tpu.memory_space<vmem>>, vector<8x32xf32>
    tpu.vector_store %arg9[%c40, %c0_50], %234 {strides = array<i32>} : memref<128x32xf32, #tpu.memory_space<vmem>>, vector<8x32xf32>,
    %236 = vector.extract_strided_slice %233 {offsets = [8, 0], sizes = [8, 32], strides = [1, 1]} : vector<16x32xf32> to vector<8x32xf32>
    %c80 = arith.constant 80 : index
    %c0_51 = arith.constant 0 : index
    %237 = vector.load %arg9[%c80, %c0_51] : memref<128x32xf32, #tpu.memory_space<vmem>>, vector<8x32xf32>
    tpu.vector_store %arg9[%c80, %c0_51], %236 {strides = array<i32>} : memref<128x32xf32, #tpu.memory_space<vmem>>, vector<8x32xf32>,
    %cst_52 = arith.constant dense<0.000000e+00> : vector<16x256xf32>
    %238 = tpu.matmul %233, %2, %cst_52 {dimension_numbers = #tpu.dot_dimension_numbers<[1], [0], [0], [1], [0, 0, 1, 1], [], []>} : vector<16x32xf32>, vector<32x256xf32>, vector<16x256xf32> -> vector<16x256xf32>
    %239 = vector.extract_strided_slice %13 {offsets = [48, 0], sizes = [8, 128], strides = [1, 1]} : vector<64x256xf32> to vector<8x128xf32>
    %240 = vector.extract_strided_slice %238 {offsets = [0, 0], sizes = [8, 128], strides = [1, 1]} : vector<16x256xf32> to vector<8x128xf32>
    %241 = arith.addf %239, %240 : vector<8x128xf32>
    %242 = vector.extract_strided_slice %13 {offsets = [8, 128], sizes = [8, 128], strides = [1, 1]} : vector<64x256xf32> to vector<8x128xf32>
    %243 = vector.extract_strided_slice %238 {offsets = [8, 128], sizes = [8, 128], strides = [1, 1]} : vector<16x256xf32> to vector<8x128xf32>
    %244 = arith.addf %242, %243 : vector<8x128xf32>
    %245 = tpu.concatenate %241, %244 in 0 : vector<8x128xf32>, vector<8x128xf32> -> vector<16x128xf32>
    %246 = vector.extract_strided_slice %245 {offsets = [0, 0], sizes = [16, 32], strides = [1, 1]} : vector<16x128xf32> to vector<16x32xf32>
    %247 = arith.negf %246 : vector<16x32xf32>
    %248 = math.exp %247 : vector<16x32xf32>
    %cst_53 = arith.constant 1.000000e+00 : f32
    %249 = vector.broadcast %cst_53 : f32 to vector<16x32xf32>
    %250 = arith.addf %249, %248 : vector<16x32xf32>
    %251 = arith.divf %249, %250 : vector<16x32xf32>
    %252 = vector.extract_strided_slice %245 {offsets = [0, 32], sizes = [16, 32], strides = [1, 1]} : vector<16x128xf32> to vector<16x32xf32>
    %253 = arith.negf %252 : vector<16x32xf32>
    %254 = math.exp %253 : vector<16x32xf32>
    %cst_54 = arith.constant 1.000000e+00 : f32
    %255 = vector.broadcast %cst_54 : f32 to vector<16x32xf32>
    %256 = arith.addf %255, %254 : vector<16x32xf32>
    %257 = arith.divf %255, %256 : vector<16x32xf32>
    %258 = vector.extract_strided_slice %245 {offsets = [0, 64], sizes = [16, 32], strides = [1, 1]} : vector<16x128xf32> to vector<16x32xf32>
    %259 = math.tanh %258 : vector<16x32xf32>
    %260 = vector.extract_strided_slice %245 {offsets = [0, 96], sizes = [16, 32], strides = [1, 1]} : vector<16x128xf32> to vector<16x32xf32>
    %261 = arith.negf %260 : vector<16x32xf32>
    %262 = math.exp %261 : vector<16x32xf32>
    %cst_55 = arith.constant 1.000000e+00 : f32
    %263 = vector.broadcast %cst_55 : f32 to vector<16x32xf32>
    %264 = arith.addf %263, %262 : vector<16x32xf32>
    %265 = arith.divf %263, %264 : vector<16x32xf32>
    %266 = arith.mulf %251, %259 : vector<16x32xf32>
    %267 = arith.mulf %257, %231 : vector<16x32xf32>
    %268 = arith.addf %266, %267 : vector<16x32xf32>
    %269 = math.tanh %268 : vector<16x32xf32>
    %270 = arith.mulf %265, %269 : vector<16x32xf32>
    %271 = vector.extract_strided_slice %270 {offsets = [0, 0], sizes = [8, 32], strides = [1, 1]} : vector<16x32xf32> to vector<8x32xf32>
    %c48 = arith.constant 48 : index
    %c0_56 = arith.constant 0 : index
    %272 = vector.load %arg9[%c48, %c0_56] : memref<128x32xf32, #tpu.memory_space<vmem>>, vector<8x32xf32>
    tpu.vector_store %arg9[%c48, %c0_56], %271 {strides = array<i32>} : memref<128x32xf32, #tpu.memory_space<vmem>>, vector<8x32xf32>,
    %273 = vector.extract_strided_slice %270 {offsets = [8, 0], sizes = [8, 32], strides = [1, 1]} : vector<16x32xf32> to vector<8x32xf32>
    %c72 = arith.constant 72 : index
    %c0_57 = arith.constant 0 : index
    %274 = vector.load %arg9[%c72, %c0_57] : memref<128x32xf32, #tpu.memory_space<vmem>>, vector<8x32xf32>
    tpu.vector_store %arg9[%c72, %c0_57], %273 {strides = array<i32>} : memref<128x32xf32, #tpu.memory_space<vmem>>, vector<8x32xf32>,
    %cst_58 = arith.constant dense<0.000000e+00> : vector<16x256xf32>
    %275 = tpu.matmul %270, %2, %cst_58 {dimension_numbers = #tpu.dot_dimension_numbers<[1], [0], [0], [1], [0, 0, 1, 1], [], []>} : vector<16x32xf32>, vector<32x256xf32>, vector<16x256xf32> -> vector<16x256xf32>
    %276 = vector.extract_strided_slice %13 {offsets = [56, 0], sizes = [8, 128], strides = [1, 1]} : vector<64x256xf32> to vector<8x128xf32>
    %277 = vector.extract_strided_slice %275 {offsets = [0, 0], sizes = [8, 128], strides = [1, 1]} : vector<16x256xf32> to vector<8x128xf32>
    %278 = arith.addf %276, %277 : vector<8x128xf32>
    %279 = vector.extract_strided_slice %13 {offsets = [0, 128], sizes = [8, 128], strides = [1, 1]} : vector<64x256xf32> to vector<8x128xf32>
    %280 = vector.extract_strided_slice %275 {offsets = [8, 128], sizes = [8, 128], strides = [1, 1]} : vector<16x256xf32> to vector<8x128xf32>
    %281 = arith.addf %279, %280 : vector<8x128xf32>
    %282 = tpu.concatenate %278, %281 in 0 : vector<8x128xf32>, vector<8x128xf32> -> vector<16x128xf32>
    %283 = vector.extract_strided_slice %282 {offsets = [0, 0], sizes = [16, 32], strides = [1, 1]} : vector<16x128xf32> to vector<16x32xf32>
    %284 = arith.negf %283 : vector<16x32xf32>
    %285 = math.exp %284 : vector<16x32xf32>
    %cst_59 = arith.constant 1.000000e+00 : f32
    %286 = vector.broadcast %cst_59 : f32 to vector<16x32xf32>
    %287 = arith.addf %286, %285 : vector<16x32xf32>
    %288 = arith.divf %286, %287 : vector<16x32xf32>
    %289 = vector.extract_strided_slice %282 {offsets = [0, 32], sizes = [16, 32], strides = [1, 1]} : vector<16x128xf32> to vector<16x32xf32>
    %290 = arith.negf %289 : vector<16x32xf32>
    %291 = math.exp %290 : vector<16x32xf32>
    %cst_60 = arith.constant 1.000000e+00 : f32
    %292 = vector.broadcast %cst_60 : f32 to vector<16x32xf32>
    %293 = arith.addf %292, %291 : vector<16x32xf32>
    %294 = arith.divf %292, %293 : vector<16x32xf32>
    %295 = vector.extract_strided_slice %282 {offsets = [0, 64], sizes = [16, 32], strides = [1, 1]} : vector<16x128xf32> to vector<16x32xf32>
    %296 = math.tanh %295 : vector<16x32xf32>
    %297 = vector.extract_strided_slice %282 {offsets = [0, 96], sizes = [16, 32], strides = [1, 1]} : vector<16x128xf32> to vector<16x32xf32>
    %298 = arith.negf %297 : vector<16x32xf32>
    %299 = math.exp %298 : vector<16x32xf32>
    %cst_61 = arith.constant 1.000000e+00 : f32
    %300 = vector.broadcast %cst_61 : f32 to vector<16x32xf32>
    %301 = arith.addf %300, %299 : vector<16x32xf32>
    %302 = arith.divf %300, %301 : vector<16x32xf32>
    %303 = arith.mulf %288, %296 : vector<16x32xf32>
    %304 = arith.mulf %294, %268 : vector<16x32xf32>
    %305 = arith.addf %303, %304 : vector<16x32xf32>
    %306 = math.tanh %305 : vector<16x32xf32>
    %307 = arith.mulf %302, %306 : vector<16x32xf32>
    %308 = vector.extract_strided_slice %307 {offsets = [0, 0], sizes = [8, 32], strides = [1, 1]} : vector<16x32xf32> to vector<8x32xf32>
    %c56 = arith.constant 56 : index
    %c0_62 = arith.constant 0 : index
    %309 = vector.load %arg9[%c56, %c0_62] : memref<128x32xf32, #tpu.memory_space<vmem>>, vector<8x32xf32>
    tpu.vector_store %arg9[%c56, %c0_62], %308 {strides = array<i32>} : memref<128x32xf32, #tpu.memory_space<vmem>>, vector<8x32xf32>,
    %310 = vector.extract_strided_slice %307 {offsets = [8, 0], sizes = [8, 32], strides = [1, 1]} : vector<16x32xf32> to vector<8x32xf32>
    %c64 = arith.constant 64 : index
    %c0_63 = arith.constant 0 : index
    %311 = vector.load %arg9[%c64, %c0_63] : memref<128x32xf32, #tpu.memory_space<vmem>>, vector<8x32xf32>
    tpu.vector_store %arg9[%c64, %c0_63], %310 {strides = array<i32>} : memref<128x32xf32, #tpu.memory_space<vmem>>, vector<8x32xf32>,
    %c0_64 = arith.constant 0 : index
    %c0_65 = arith.constant 0 : index
    %312 = vector.load %arg9[%c0_64, %c0_65] : memref<128x32xf32, #tpu.memory_space<vmem>>, vector<64x32xf32>
    %313 = vector.extract_strided_slice %7 {offsets = [0, 0], sizes = [32, 128], strides = [1, 1]} : vector<64x128xf32> to vector<32x128xf32>
    %cst_66 = arith.constant dense<0.000000e+00> : vector<64x128xf32>
    %314 = tpu.matmul %312, %313, %cst_66 {dimension_numbers = #tpu.dot_dimension_numbers<[1], [0], [0], [1], [0, 0, 1, 1], [], []>} : vector<64x32xf32>, vector<32x128xf32>, vector<64x128xf32> -> vector<64x128xf32>
    %c0_67 = arith.constant 0 : index
    %c0_68 = arith.constant 0 : index
    %315 = vector.load %arg7[%c0_67, %c0_68] : memref<1x128xf32, #tpu.memory_space<vmem>>, vector<1x128xf32>
    %316 = vector.broadcast %315 : vector<1x128xf32> to vector<64x128xf32>
    %317 = arith.addf %314, %316 : vector<64x128xf32>
    %c0_69 = arith.constant 0 : index
    %c0_70 = arith.constant 0 : index
    %318 = vector.load %arg8[%c0_69, %c0_70] : memref<128x128xf32, #tpu.memory_space<vmem>>, vector<64x128xf32>
    tpu.vector_store %arg8[%c0_69, %c0_70], %317 {strides = array<i32>} : memref<128x128xf32, #tpu.memory_space<vmem>>, vector<64x128xf32>,
    %c64_71 = arith.constant 64 : index
    %c0_72 = arith.constant 0 : index
    %319 = vector.load %arg9[%c64_71, %c0_72] : memref<128x32xf32, #tpu.memory_space<vmem>>, vector<64x32xf32>
    %320 = vector.extract_strided_slice %7 {offsets = [32, 0], sizes = [32, 128], strides = [1, 1]} : vector<64x128xf32> to vector<32x128xf32>
    %cst_73 = arith.constant dense<0.000000e+00> : vector<64x128xf32>
    %321 = tpu.matmul %319, %320, %cst_73 {dimension_numbers = #tpu.dot_dimension_numbers<[1], [0], [0], [1], [0, 0, 1, 1], [], []>} : vector<64x32xf32>, vector<32x128xf32>, vector<64x128xf32> -> vector<64x128xf32>
    %c0_74 = arith.constant 0 : index
    %c0_75 = arith.constant 0 : index
    %322 = vector.load %arg7[%c0_74, %c0_75] : memref<1x128xf32, #tpu.memory_space<vmem>>, vector<1x128xf32>
    %323 = vector.broadcast %322 : vector<1x128xf32> to vector<64x128xf32>
    %324 = arith.addf %321, %323 : vector<64x128xf32>
    %c64_76 = arith.constant 64 : index
    %c0_77 = arith.constant 0 : index
    %325 = vector.load %arg8[%c64_76, %c0_77] : memref<128x128xf32, #tpu.memory_space<vmem>>, vector<64x128xf32>
    tpu.vector_store %arg8[%c64_76, %c0_77], %324 {strides = array<i32>} : memref<128x128xf32, #tpu.memory_space<vmem>>, vector<64x128xf32>,
    return
  }
  func.func @transform_0(%arg0: i32) -> (i32, i32) {
    %c0_i32 = arith.constant 0 : i32
    %c0_i32_0 = arith.constant 0 : i32
    %c0_i32_1 = arith.constant 0 : i32
    return %c0_i32, %c0_i32_0 : i32, i32
  }
  func.func @transform_1(%arg0: i32) -> (i32, i32) {
    %c0_i32 = arith.constant 0 : i32
    %c0_i32_0 = arith.constant 0 : i32
    %c0_i32_1 = arith.constant 0 : i32
    return %c0_i32, %c0_i32_0 : i32, i32
  }
  func.func @transform_2(%arg0: i32) -> (i32, i32) {
    %c0_i32 = arith.constant 0 : i32
    %c0_i32_0 = arith.constant 0 : i32
    %c0_i32_1 = arith.constant 0 : i32
    return %c0_i32, %c0_i32_0 : i32, i32
  }
  func.func @transform_3(%arg0: i32) -> (i32, i32) {
    %c0_i32 = arith.constant 0 : i32
    %c0_i32_0 = arith.constant 0 : i32
    %c0_i32_1 = arith.constant 0 : i32
    return %c0_i32, %c0_i32_0 : i32, i32
  }
  func.func @transform_4(%arg0: i32) -> (i32, i32) {
    %c0_i32 = arith.constant 0 : i32
    %c0_i32_0 = arith.constant 0 : i32
    %c0_i32_1 = arith.constant 0 : i32
    return %c0_i32, %c0_i32_0 : i32, i32
  }
  func.func @transform_5(%arg0: i32) -> (i32, i32) {
    %c0_i32 = arith.constant 0 : i32
    %c0_i32_0 = arith.constant 0 : i32
    %c0_i32_1 = arith.constant 0 : i32
    return %c0_i32, %c0_i32_0 : i32, i32
  }
  func.func @transform_6(%arg0: i32) -> (i32, i32) {
    %c0_i32 = arith.constant 0 : i32
    %c0_i32_0 = arith.constant 0 : i32
    %c0_i32_1 = arith.constant 0 : i32
    return %c0_i32, %c0_i32_0 : i32, i32
  }
  func.func @transform_7(%arg0: i32) -> (i32, i32) {
    %c0_i32 = arith.constant 0 : i32
    %c0_i32_0 = arith.constant 0 : i32
    %c0_i32_1 = arith.constant 0 : i32
    return %c0_i32, %c0_i32_0 : i32, i32
  }
}

</mosaic_0001>

<llo_original>
// kernel: model_forward.1
$region0: #{model_forward.1}
  #allocation0 [shape = 'u32[]', space=smem, size = 0x4, offset = 0x4, fixed_abs, tag = 'smem constant byte address 0x4 - core index']
  #allocation1 [shape = 'u32[144,128]{1,0:T(1,128)}', space=vmem, size = 0x12000, scoped, tag = 'internal scratch']
  #allocation2 [shape = 'f32[128,32]{1,0:T(8,128)}', space=vmem, size = 0x10000, scoped, tag = 'scratch operand']
  %s0 = inlined_call_operand.vmem [shape: f32[64,300], index: 0, kind: input, shape index: {}]
  %s1 = inlined_call_operand.vmem [shape: f32[300,256], index: 1, kind: input, shape index: {}]
  %s2 = inlined_call_operand.vmem [shape: f32[1,256], index: 2, kind: input, shape index: {}]
  %s3 = inlined_call_operand.vmem [shape: f32[64,256], index: 3, kind: input, shape index: {}]
  %s4 = inlined_call_operand.vmem [shape: f32[32,64], index: 4, kind: input, shape index: {}]
  %s5 = inlined_call_operand.vmem [shape: f32[32,128], index: 5, kind: input, shape index: {}]
  %s6 = inlined_call_operand.vmem [shape: f32[1,128], index: 6, kind: input, shape index: {}]
  %s7 = inlined_call_operand.vmem [shape: f32[128,128], index: 7, kind: output, shape index: {}]
  %s8 = sld [smem:[#allocation0]]
  $region38: #{model_forward.1} parent=0
    _
  %s10 = ssub.s32 1, %s8
  %s11 = scalar_select 0, %s10, %s8
  // Predicated region
  $region2: #{model_forward.1} parent=0 // pred_check
    _
  $region3: #{model_forward.1} parent=0 // pred_check_branch
    %13 = sbr.rel (0) target = $region5
  $region4: #{model_forward.1} parent=0 // pred_region
    _
  $region5: #{model_forward.1} parent=0 // pred_fallthru
    _
  // Predicated region
  $region6: #{model_forward.1} parent=0 // pred_check
    _
  $region7: #{model_forward.1} parent=0 // pred_check_branch
    %15 = sbr.rel (0) target = $region9
  $region8: #{model_forward.1} parent=0 // pred_region
    _
  $region9: #{model_forward.1} parent=0 // pred_fallthru
    _
  // Predicated region
  $region10: #{model_forward.1} parent=0 // pred_check
    _
  $region11: #{model_forward.1} parent=0 // pred_check_branch
    %17 = sbr.rel (0) target = $region13
  $region12: #{model_forward.1} parent=0 // pred_region
    _
  $region13: #{model_forward.1} parent=0 // pred_fallthru
    _
  // Predicated region
  $region14: #{model_forward.1} parent=0 // pred_check
    _
  $region15: #{model_forward.1} parent=0 // pred_check_branch
    %19 = sbr.rel (0) target = $region17
  $region16: #{model_forward.1} parent=0 // pred_region
    _
  $region17: #{model_forward.1} parent=0 // pred_fallthru
    _
  // Predicated region
  $region18: #{model_forward.1} parent=0 // pred_check
    _
  $region19: #{model_forward.1} parent=0 // pred_check_branch
    %21 = sbr.rel (0) target = $region21
  $region20: #{model_forward.1} parent=0 // pred_region
    _
  $region21: #{model_forward.1} parent=0 // pred_fallthru
    _
  // Predicated region
  $region22: #{model_forward.1} parent=0 // pred_check
    _
  $region23: #{model_forward.1} parent=0 // pred_check_branch
    %23 = sbr.rel (0) target = $region25
  $region24: #{model_forward.1} parent=0 // pred_region
    _
  $region25: #{model_forward.1} parent=0 // pred_fallthru
    _
  // Predicated region
  $region26: #{model_forward.1} parent=0 // pred_check
    _
  $region27: #{model_forward.1} parent=0 // pred_check_branch
    %25 = sbr.rel (0) target = $region29
  $region28: #{model_forward.1} parent=0 // pred_region
    _
  $region29: #{model_forward.1} parent=0 // pred_fallthru
    _
  %v26 = vld [vmem:[%s4] sm:$0xff]
  %v27 = vld [vmem:[%s4 + $0x8] sm:$0xff]
  %v28 = vld [vmem:[%s4 + $0x10] sm:$0xff]
  %v29 = vld [vmem:[%s4 + $0x18] sm:$0xff]
  %v30 = vld [vmem:[%s3] sm:$0xff]
  %v31 = vld [vmem:[%s3 + $0x8] sm:$0xff]
  %v32 = vld [vmem:[%s3 + $0x10] sm:$0xff]
  %v33 = vld [vmem:[%s3 + $0x18] sm:$0xff]
  %v34 = vld [vmem:[%s3 + $0x20] sm:$0xff]
  %v35 = vld [vmem:[%s3 + $0x28] sm:$0xff]
  %v36 = vld [vmem:[%s3 + $0x30] sm:$0xff]
  %v37 = vld [vmem:[%s3 + $0x38] sm:$0xff]
  %v38 = vld [vmem:[%s3 + $0x40] sm:$0xff]
  %v39 = vld [vmem:[%s3 + $0x48] sm:$0xff]
  %v40 = vld [vmem:[%s3 + $0x50] sm:$0xff]
  %v41 = vld [vmem:[%s3 + $0x58] sm:$0xff]
  %v42 = vld [vmem:[%s3 + $0x60] sm:$0xff]
  %v43 = vld [vmem:[%s3 + $0x68] sm:$0xff]
  %v44 = vld [vmem:[%s3 + $0x70] sm:$0xff]
  %v45 = vld [vmem:[%s3 + $0x78] sm:$0xff]
  %vm46 = vcmask 523264
  %v48 = vsel %vm46, %v26, 0
  %v51 = vsel %vm46, %v27, 0
  %v54 = vsel %vm46, %v28, 0
  %v57 = vsel %vm46, %v29, 0
  %59 = vmatprep.subr.mxu0 %v31
  %60 = vmatpush1.msra.mxu0 %v30
  %61 = vmatprep.subr.mxu0 %v33
  %62 = vmatpush1.msra.mxu0 %v32
  %63 = vmatprep.subr.mxu0 %v35
  %64 = vmatpush1.msra.mxu0 %v34
  %65 = vmatprep.subr.mxu0 %v37
  %66 = vmatpush1.msra.mxu0 %v36
  %67 = vmatprep.subr.mxu0 %v39
  %68 = vmatpush1.msra.mxu0 %v38
  %69 = vmatprep.subr.mxu0 %v41
  %70 = vmatpush1.msra.mxu0 %v40
  %71 = vmatprep.subr.mxu0 %v43
  %72 = vmatpush1.msra.mxu0 %v42
  %73 = vmatprep.subr.mxu0 %v45
  %74 = vmatpush1.msra.mxu0 %v44
  %75 = vmatprep.subr.mxu0 0.0
  %76 = vmatpush1.msra.mxu0 0.0
  %77 = vmatprep.subr.mxu0 0.0
  %78 = vmatpush1.msra.mxu0 0.0
  %79 = vmatprep.subr.mxu0 0.0
  %80 = vmatpush1.msra.mxu0 0.0
  %81 = vmatprep.subr.mxu0 0.0
  %82 = vmatpush1.msra.mxu0 0.0
  %83 = vmatprep.subr.mxu0 0.0
  %84 = vmatpush1.msra.mxu0 0.0
  %85 = vmatprep.subr.mxu0 0.0
  %86 = vmatpush1.msra.mxu0 0.0
  %87 = vmatprep.subr.mxu0 0.0
  %88 = vmatpush1.msra.mxu0 0.0
  %89 = vmatprep.subr.mxu0 0.0
  %90 = vmatpush1.msra.mxu0 0.0
  %91 = vmatprep.subr.mxu0 0.0
  %92 = vmatpush1.msra.mxu0 0.0
  %93 = vmatprep.subr.mxu0 0.0
  %94 = vmatpush1.msra.mxu0 0.0
  %95 = vmatprep.subr.mxu0 0.0
  %96 = vmatpush1.msra.mxu0 0.0
  %97 = vmatprep.subr.mxu0 0.0
  %98 = vmatpush1.msra.mxu0 0.0
  %99 = vmatprep.subr.mxu0 0.0
  %100 = vmatpush1.msra.mxu0 0.0
  %101 = vmatprep.subr.mxu0 0.0
  %102 = vmatpush1.msra.mxu0 0.0
  %103 = vmatprep.subr.mxu0 0.0
  %104 = vmatpush1.msra.mxu0 0.0
  %105 = vmatprep.subr.mxu0 0.0
  %106 = vmatpush1.msra.mxu0 0.0
  %107 = vmatprep.subr.mxu0 0.0
  %108 = vmatpush1.msra.mxu0 0.0
  %109 = vmatprep.subr.mxu0 0.0
  %110 = vmatpush1.msra.mxu0 0.0
  %111 = vmatprep.subr.mxu0 0.0
  %112 = vmatpush1.msra.mxu0 0.0
  %113 = vmatprep.subr.mxu0 0.0
  %114 = vmatpush1.msra.mxu0 0.0
  %115 = vmatprep.subr.mxu0 0.0
  %116 = vmatpush1.msra.mxu0 0.0
  %117 = vmatprep.subr.mxu0 0.0
  %118 = vmatpush1.msra.mxu0 0.0
  %119 = vmatprep.subr.mxu0 0.0
  %120 = vmatpush1.msra.mxu0 0.0
  %121 = vmatprep.subr.mxu0 0.0
  %122 = vmatpush1.msra.mxu0 0.0
  %123 = vmatprep.mubr.f32.mxu0 0.0
  %124 = vmatmul.mubr.f32.gmra.mrb[0].mxu0 %v48
  %v125 = vpop.f32.mrb[0].mxu0
  %v126 = vadd.f32 0.0, %v125
  %v127 = vpop.f32.mrb[0].mxu0
  %v128 = vadd.f32 0.0, %v127
  %129 = vmatprep.mubr.f32.mxu0 0.0
  %130 = vmatmul.mubr.f32.gmra.mrb[0].mxu0 %v51
  %v131 = vpop.f32.mrb[0].mxu0
  %v132 = vadd.f32 0.0, %v131
  %v133 = vpop.f32.mrb[0].mxu0
  %v134 = vadd.f32 0.0, %v133
  %135 = vmatprep.mubr.f32.mxu0 0.0
  %136 = vmatmul.mubr.f32.gmra.mrb[0].mxu0 %v54
  %v137 = vpop.f32.mrb[0].mxu0
  %v138 = vadd.f32 0.0, %v137
  %v139 = vpop.f32.mrb[0].mxu0
  %v140 = vadd.f32 0.0, %v139
  %141 = vmatprep.mubr.f32.mxu0 0.0
  %142 = vmatmul.mubr.f32.gmra.mrb[0].mxu0 %v57
  %v143 = vpop.f32.mrb[0].mxu0
  %v144 = vadd.f32 0.0, %v143
  %v145 = vpop.f32.mrb[0].mxu0
  %v146 = vadd.f32 0.0, %v145
  %147 = vdwg.mxu0
  %148 = vrot.lane.b32.xlu0 %v26, 96
  %v149 = vpop.permute.xlu0 %148
  %150 = vrot.lane.b32.xlu0 %v27, 96
  %v151 = vpop.permute.xlu0 %150
  %152 = vrot.lane.b32.xlu0 %v28, 96
  %v153 = vpop.permute.xlu0 %152
  %154 = vrot.lane.b32.xlu0 %v29, 96
  %v155 = vpop.permute.xlu0 %154
  %v156 = vld [vmem:[%s5] sm:$0xff]
  %v157 = vld [vmem:[%s5 + $0x8] sm:$0xff]
  %v158 = vld [vmem:[%s5 + $0x10] sm:$0xff]
  %v159 = vld [vmem:[%s5 + $0x18] sm:$0xff]
  %vm160 = vcmask 261120
  %v161 = vsel %vm160, %v26, 0
  %v163 = vsel %vm160, %v27, 0
  %v165 = vsel %vm160, %v28, 0
  %v167 = vsel %vm160, %v29, 0
  %v169 = vsel %vm160, %v149, 0
  %v171 = vsel %vm160, %v151, 0
  %v173 = vsel %vm160, %v153, 0
  %v175 = vsel %vm160, %v155, 0
  %177 = vmatprep.subr.mxu0 0.0
  %178 = vmatpush1.msra.mxu0 %v156
  %179 = vmatprep.subr.mxu0 0.0
  %180 = vmatpush1.msra.mxu0 %v157
  %181 = vmatprep.subr.mxu0 0.0
  %182 = vmatpush1.msra.mxu0 %v158
  %183 = vmatprep.subr.mxu0 0.0
  %184 = vmatpush1.msra.mxu0 %v159
  %185 = vmatprep.subr.mxu0 0.0
  %186 = vmatpush1.msra.mxu0 0.0
  %187 = vmatprep.subr.mxu0 0.0
  %188 = vmatpush1.msra.mxu0 0.0
  %189 = vmatprep.subr.mxu0 0.0
  %190 = vmatpush1.msra.mxu0 0.0
  %191 = vmatprep.subr.mxu0 0.0
  %192 = vmatpush1.msra.mxu0 0.0
  %193 = vmatprep.subr.mxu0 0.0
  %194 = vmatpush1.msra.mxu0 0.0
  %195 = vmatprep.subr.mxu0 0.0
  %196 = vmatpush1.msra.mxu0 0.0
  %197 = vmatprep.subr.mxu0 0.0
  %198 = vmatpush1.msra.mxu0 0.0
  %199 = vmatprep.subr.mxu0 0.0
  %200 = vmatpush1.msra.mxu0 0.0
  %201 = vmatprep.subr.mxu0 0.0
  %202 = vmatpush1.msra.mxu0 0.0
  %203 = vmatprep.subr.mxu0 0.0
  %204 = vmatpush1.msra.mxu0 0.0
  %205 = vmatprep.subr.mxu0 0.0
  %206 = vmatpush1.msra.mxu0 0.0
  %207 = vmatprep.subr.mxu0 0.0
  %208 = vmatpush1.msra.mxu0 0.0
  %209 = vmatprep.subr.mxu0 0.0
  %210 = vmatpush1.msra.mxu0 0.0
  %211 = vmatprep.subr.mxu0 0.0
  %212 = vmatpush1.msra.mxu0 0.0
  %213 = vmatprep.subr.mxu0 0.0
  %214 = vmatpush1.msra.mxu0 0.0
  %215 = vmatprep.subr.mxu0 0.0
  %216 = vmatpush1.msra.mxu0 0.0
  %217 = vmatprep.subr.mxu0 0.0
  %218 = vmatpush1.msra.mxu0 0.0
  %219 = vmatprep.subr.mxu0 0.0
  %220 = vmatpush1.msra.mxu0 0.0
  %221 = vmatprep.subr.mxu0 0.0
  %222 = vmatpush1.msra.mxu0 0.0
  %223 = vmatprep.subr.mxu0 0.0
  %224 = vmatpush1.msra.mxu0 0.0
  %225 = vmatprep.subr.mxu0 0.0
  %226 = vmatpush1.msra.mxu0 0.0
  %227 = vmatprep.subr.mxu0 0.0
  %228 = vmatpush1.msra.mxu0 0.0
  %229 = vmatprep.subr.mxu0 0.0
  %230 = vmatpush1.msra.mxu0 0.0
  %231 = vmatprep.subr.mxu0 0.0
  %232 = vmatpush1.msra.mxu0 0.0
  %233 = vmatprep.subr.mxu0 0.0
  %234 = vmatpush1.msra.mxu0 0.0
  %235 = vmatprep.subr.mxu0 0.0
  %236 = vmatpush1.msra.mxu0 0.0
  %237 = vmatprep.subr.mxu0 0.0
  %238 = vmatpush1.msra.mxu0 0.0
  %239 = vmatprep.subr.mxu0 0.0
  %240 = vmatpush1.msra.mxu0 0.0
  %241 = vmatprep.mubr.f32.mxu0 0.0
  %242 = vmatmul.mubr.f32.gmra.mrb[0].mxu0 %v161
  %v243 = vpop.f32.mrb[0].mxu0
  %v244 = vadd.f32 0.0, %v243
  %v245 = vpop.f32.mrb[0].mxu0
  %246 = vmatprep.mubr.f32.mxu0 0.0
  %247 = vmatmul.mubr.f32.gmra.mrb[0].mxu0 %v163
  %v248 = vpop.f32.mrb[0].mxu0
  %v249 = vadd.f32 0.0, %v248
  %v250 = vpop.f32.mrb[0].mxu0
  %251 = vmatprep.mubr.f32.mxu0 0.0
  %252 = vmatmul.mubr.f32.gmra.mrb[0].mxu0 %v165
  %v253 = vpop.f32.mrb[0].mxu0
  %v254 = vadd.f32 0.0, %v253
  %v255 = vpop.f32.mrb[0].mxu0
  %256 = vmatprep.mubr.f32.mxu0 0.0
  %257 = vmatmul.mubr.f32.gmra.mrb[0].mxu0 %v167
  %v258 = vpop.f32.mrb[0].mxu0
  %v259 = vadd.f32 0.0, %v258
  %v260 = vpop.f32.mrb[0].mxu0
  %261 = vmatprep.mubr.f32.mxu0 0.0
  %262 = vmatmul.mubr.f32.gmra.mrb[0].mxu0 %v169
  %v263 = vpop.f32.mrb[0].mxu0
  %v264 = vadd.f32 0.0, %v263
  %v265 = vpop.f32.mrb[0].mxu0
  %266 = vmatprep.mubr.f32.mxu0 0.0
  %267 = vmatmul.mubr.f32.gmra.mrb[0].mxu0 %v171
  %v268 = vpop.f32.mrb[0].mxu0
  %v269 = vadd.f32 0.0, %v268
  %v270 = vpop.f32.mrb[0].mxu0
  %271 = vmatprep.mubr.f32.mxu0 0.0
  %272 = vmatmul.mubr.f32.gmra.mrb[0].mxu0 %v173
  %v273 = vpop.f32.mrb[0].mxu0
  %v274 = vadd.f32 0.0, %v273
  %v275 = vpop.f32.mrb[0].mxu0
  %276 = vmatprep.mubr.f32.mxu0 0.0
  %277 = vmatmul.mubr.f32.gmra.mrb[0].mxu0 %v175
  %v278 = vpop.f32.mrb[0].mxu0
  %v279 = vadd.f32 0.0, %v278
  %v280 = vpop.f32.mrb[0].mxu0
  %281 = vdwg.mxu0
  %v282 = vld [vmem:[%s0] sm:$0xff]
  %v283 = vld [vmem:[%s0 + $0x8] sm:$0xff]
  %v284 = vld [vmem:[%s0 + $0x10] sm:$0xff]
  %v285 = vld [vmem:[%s0 + $0x18] sm:$0xff]
  %v286 = vld [vmem:[%s0 + $0x20] sm:$0xff]
  %v287 = vld [vmem:[%s0 + $0x28] sm:$0xff]
  %v288 = vld [vmem:[%s0 + $0x30] sm:$0xff]
  %v289 = vld [vmem:[%s0 + $0x38] sm:$0xff]
  %v290 = vld [vmem:[%s0 + $0x40] sm:$0xff]
  %v291 = vld [vmem:[%s0 + $0x48] sm:$0xff]
  %v292 = vld [vmem:[%s0 + $0x50] sm:$0xff]
  %v293 = vld [vmem:[%s0 + $0x58] sm:$0xff]
  %v294 = vld [vmem:[%s0 + $0x60] sm:$0xff]
  %v295 = vld [vmem:[%s0 + $0x68] sm:$0xff]
  %v296 = vld [vmem:[%s0 + $0x70] sm:$0xff]
  %v297 = vld [vmem:[%s0 + $0x78] sm:$0xff]
  %v298 = vld [vmem:[%s0 + $0x80] sm:$0xff]
  %v299 = vld [vmem:[%s0 + $0x88] sm:$0xff]
  %v300 = vld [vmem:[%s0 + $0x90] sm:$0xff]
  %v301 = vld [vmem:[%s0 + $0x98] sm:$0xff]
  %v302 = vld [vmem:[%s0 + $0xa0] sm:$0xff]
  %v303 = vld [vmem:[%s0 + $0xa8] sm:$0xff]
  %v304 = vld [vmem:[%s0 + $0xb0] sm:$0xff]
  %v305 = vld [vmem:[%s0 + $0xb8] sm:$0xff]
  %v306 = vld [vmem:[%s1] sm:$0xff]
  %v307 = vld [vmem:[%s1 + $0x8] sm:$0xff]
  %v308 = vld [vmem:[%s1 + $0x10] sm:$0xff]
  %v309 = vld [vmem:[%s1 + $0x18] sm:$0xff]
  %v310 = vld [vmem:[%s1 + $0x20] sm:$0xff]
  %v311 = vld [vmem:[%s1 + $0x28] sm:$0xff]
  %v312 = vld [vmem:[%s1 + $0x30] sm:$0xff]
  %v313 = vld [vmem:[%s1 + $0x38] sm:$0xff]
  %v314 = vld [vmem:[%s1 + $0x40] sm:$0xff]
  %v315 = vld [vmem:[%s1 + $0x48] sm:$0xff]
  %v316 = vld [vmem:[%s1 + $0x50] sm:$0xff]
  %v317 = vld [vmem:[%s1 + $0x58] sm:$0xff]
  %v318 = vld [vmem:[%s1 + $0x60] sm:$0xff]
  %v319 = vld [vmem:[%s1 + $0x68] sm:$0xff]
  %v320 = vld [vmem:[%s1 + $0x70] sm:$0xff]
  %v321 = vld [vmem:[%s1 + $0x78] sm:$0xff]
  %v322 = vld [vmem:[%s1 + $0x80] sm:$0xff]
  %v323 = vld [vmem:[%s1 + $0x88] sm:$0xff]
  %v324 = vld [vmem:[%s1 + $0x90] sm:$0xff]
  %v325 = vld [vmem:[%s1 + $0x98] sm:$0xff]
  %v326 = vld [vmem:[%s1 + $0xa0] sm:$0xff]
  %v327 = vld [vmem:[%s1 + $0xa8] sm:$0xff]
  %v328 = vld [vmem:[%s1 + $0xb0] sm:$0xff]
  %v329 = vld [vmem:[%s1 + $0xb8] sm:$0xff]
  %v330 = vld [vmem:[%s1 + $0xc0] sm:$0xff]
  %v331 = vld [vmem:[%s1 + $0xc8] sm:$0xff]
  %v332 = vld [vmem:[%s1 + $0xd0] sm:$0xff]
  %v333 = vld [vmem:[%s1 + $0xd8] sm:$0xff]
  %v334 = vld [vmem:[%s1 + $0xe0] sm:$0xff]
  %v335 = vld [vmem:[%s1 + $0xe8] sm:$0xff]
  %v336 = vld [vmem:[%s1 + $0xf0] sm:$0xff]
  %v337 = vld [vmem:[%s1 + $0xf8] sm:$0xff]
  %v338 = vld [vmem:[%s1 + $0x100] sm:$0xff]
  %v339 = vld [vmem:[%s1 + $0x108] sm:$0xff]
  %v340 = vld [vmem:[%s1 + $0x110] sm:$0xff]
  %v341 = vld [vmem:[%s1 + $0x118] sm:$0xff]
  %v342 = vld [vmem:[%s1 + $0x120] sm:$0xff]
  %v343 = vld [vmem:[%s1 + $0x128] sm:$0xff]
  %v344 = vld [vmem:[%s1 + $0x130] sm:$0xff]
  %v345 = vld [vmem:[%s1 + $0x138] sm:$0xff]
  %v346 = vld [vmem:[%s1 + $0x140] sm:$0xff]
  %v347 = vld [vmem:[%s1 + $0x148] sm:$0xff]
  %v348 = vld [vmem:[%s1 + $0x150] sm:$0xff]
  %v349 = vld [vmem:[%s1 + $0x158] sm:$0xff]
  %v350 = vld [vmem:[%s1 + $0x160] sm:$0xff]
  %v351 = vld [vmem:[%s1 + $0x168] sm:$0xff]
  %v352 = vld [vmem:[%s1 + $0x170] sm:$0xff]
  %v353 = vld [vmem:[%s1 + $0x178] sm:$0xff]
  %v354 = vld [vmem:[%s1 + $0x180] sm:$0xff]
  %v355 = vld [vmem:[%s1 + $0x188] sm:$0xff]
  %v356 = vld [vmem:[%s1 + $0x190] sm:$0xff]
  %v357 = vld [vmem:[%s1 + $0x198] sm:$0xff]
  %v358 = vld [vmem:[%s1 + $0x1a0] sm:$0xff]
  %v359 = vld [vmem:[%s1 + $0x1a8] sm:$0xff]
  %v360 = vld [vmem:[%s1 + $0x1b0] sm:$0xff]
  %v361 = vld [vmem:[%s1 + $0x1b8] sm:$0xff]
  %v362 = vld [vmem:[%s1 + $0x1c0] sm:$0xff]
  %v363 = vld [vmem:[%s1 + $0x1c8] sm:$0xff]
  %v364 = vld [vmem:[%s1 + $0x1d0] sm:$0xff]
  %v365 = vld [vmem:[%s1 + $0x1d8] sm:$0xff]
  %v366 = vld [vmem:[%s1 + $0x1e0] sm:$0xff]
  %v367 = vld [vmem:[%s1 + $0x1e8] sm:$0xff]
  %v368 = vld [vmem:[%s1 + $0x1f0] sm:$0xff]
  %v369 = vld [vmem:[%s1 + $0x1f8] sm:$0xff]
  %v370 = vld [vmem:[%s1 + $0x200] sm:$0xff]
  %v371 = vld [vmem:[%s1 + $0x208] sm:$0xff]
  %v372 = vld [vmem:[%s1 + $0x210] sm:$0xff]
  %v373 = vld [vmem:[%s1 + $0x218] sm:$0xff]
  %v374 = vld [vmem:[%s1 + $0x220] sm:$0xff]
  %v375 = vld [vmem:[%s1 + $0x228] sm:$0xff]
  %v376 = vld [vmem:[%s1 + $0x230] sm:$0xff]
  %v377 = vld [vmem:[%s1 + $0x238] sm:$0xff]
  %v378 = vld [vmem:[%s1 + $0x240] sm:$0xff]
  %v379 = vld [vmem:[%s1 + $0x248] sm:$0xff]
  %v380 = vld [vmem:[%s1 + $0x250] sm:$0xf]
  %v381 = vld [vmem:[%s1 + $0x258] sm:$0xf]
  %v382 = vld [vmem:[%s2] sm:$0x3]
  %v384 = vlaneseq
  %v385 = vshrl.u32 %v384, 7
  %v386 = vsub.s32 0, %v385
  %v387 = vrot.slane %v382, %v386
  %v388 = vlaneseq
  %v389 = vshrl.u32 %v388, 7
  %v390 = vsub.s32 1, %v389
  %v391 = vrot.slane %v382, %v390
  %vm394 = vcmask 359424
  %v396 = vsel %vm394, %v284, 0
  %v399 = vsel %vm394, %v287, 0
  %v402 = vsel %vm394, %v290, 0
  %v405 = vsel %vm394, %v293, 0
  %v408 = vsel %vm394, %v296, 0
  %v411 = vsel %vm394, %v299, 0
  %v414 = vsel %vm394, %v302, 0
  %v417 = vsel %vm394, %v305, 0
  %vm419 = vcmask 1043456
  %v421 = vsel %vm419, %v380, 0
  %v424 = vsel %vm419, %v381, 0
  %426 = vmatprep.subr.mxu0 %v307
  %427 = vmatpush1.msra.mxu0 %v306
  %428 = vmatprep.subr.mxu0 %v309
  %429 = vmatpush1.msra.mxu0 %v308
  %430 = vmatprep.subr.mxu0 %v311
  %431 = vmatpush1.msra.mxu0 %v310
  %432 = vmatprep.subr.mxu0 %v313
  %433 = vmatpush1.msra.mxu0 %v312
  %434 = vmatprep.subr.mxu0 %v315
  %435 = vmatpush1.msra.mxu0 %v314
  %436 = vmatprep.subr.mxu0 %v317
  %437 = vmatpush1.msra.mxu0 %v316
  %438 = vmatprep.subr.mxu0 %v319
  %439 = vmatpush1.msra.mxu0 %v318
  %440 = vmatprep.subr.mxu0 %v321
  %441 = vmatpush1.msra.mxu0 %v320
  %442 = vmatprep.subr.mxu0 %v323
  %443 = vmatpush1.msra.mxu0 %v322
  %444 = vmatprep.subr.mxu0 %v325
  %445 = vmatpush1.msra.mxu0 %v324
  %446 = vmatprep.subr.mxu0 %v327
  %447 = vmatpush1.msra.mxu0 %v326
  %448 = vmatprep.subr.mxu0 %v329
  %449 = vmatpush1.msra.mxu0 %v328
  %450 = vmatprep.subr.mxu0 %v331
  %451 = vmatpush1.msra.mxu0 %v330
  %452 = vmatprep.subr.mxu0 %v333
  %453 = vmatpush1.msra.mxu0 %v332
  %454 = vmatprep.subr.mxu0 %v335
  %455 = vmatpush1.msra.mxu0 %v334
  %456 = vmatprep.subr.mxu0 %v337
  %457 = vmatpush1.msra.mxu0 %v336
  %458 = vmatprep.subr.mxu0 %v339
  %459 = vmatpush1.msra.mxu0 %v338
  %460 = vmatprep.subr.mxu0 %v341
  %461 = vmatpush1.msra.mxu0 %v340
  %462 = vmatprep.subr.mxu0 %v343
  %463 = vmatpush1.msra.mxu0 %v342
  %464 = vmatprep.subr.mxu0 %v345
  %465 = vmatpush1.msra.mxu0 %v344
  %466 = vmatprep.subr.mxu0 %v347
  %467 = vmatpush1.msra.mxu0 %v346
  %468 = vmatprep.subr.mxu0 %v349
  %469 = vmatpush1.msra.mxu0 %v348
  %470 = vmatprep.subr.mxu0 %v351
  %471 = vmatpush1.msra.mxu0 %v350
  %472 = vmatprep.subr.mxu0 %v353
  %473 = vmatpush1.msra.mxu0 %v352
  %474 = vmatprep.subr.mxu0 %v355
  %475 = vmatpush1.msra.mxu0 %v354
  %476 = vmatprep.subr.mxu0 %v357
  %477 = vmatpush1.msra.mxu0 %v356
  %478 = vmatprep.subr.mxu0 %v359
  %479 = vmatpush1.msra.mxu0 %v358
  %480 = vmatprep.subr.mxu0 %v361
  %481 = vmatpush1.msra.mxu0 %v360
  %482 = vmatprep.subr.mxu0 %v363
  %483 = vmatpush1.msra.mxu0 %v362
  %484 = vmatprep.subr.mxu0 %v365
  %485 = vmatpush1.msra.mxu0 %v364
  %486 = vmatprep.subr.mxu0 %v367
  %487 = vmatpush1.msra.mxu0 %v366
  %488 = vmatprep.subr.mxu0 %v369
  %489 = vmatpush1.msra.mxu0 %v368
  %490 = vmatprep.mubr.f32.mxu0 %v283
  %491 = vmatmul.mubr.f32.gmra.mrb[0].mxu0 %v282
  %v492 = vpop.f32.mrb[0].mxu0
  %v493 = vadd.f32 %v387, %v492
  %v494 = vpop.f32.mrb[0].mxu0
  %v495 = vadd.f32 %v391, %v494
  %496 = vmatprep.mubr.f32.mxu0 %v286
  %497 = vmatmul.mubr.f32.gmra.mrb[0].mxu0 %v285
  %v498 = vpop.f32.mrb[0].mxu0
  %v499 = vadd.f32 %v387, %v498
  %v500 = vpop.f32.mrb[0].mxu0
  %v501 = vadd.f32 %v391, %v500
  %502 = vmatprep.mubr.f32.mxu0 %v289
  %503 = vmatmul.mubr.f32.gmra.mrb[0].mxu0 %v288
  %v504 = vpop.f32.mrb[0].mxu0
  %v505 = vadd.f32 %v387, %v504
  %v506 = vpop.f32.mrb[0].mxu0
  %v507 = vadd.f32 %v391, %v506
  %508 = vmatprep.mubr.f32.mxu0 %v292
  %509 = vmatmul.mubr.f32.gmra.mrb[0].mxu0 %v291
  %v510 = vpop.f32.mrb[0].mxu0
  %v511 = vadd.f32 %v387, %v510
  %v512 = vpop.f32.mrb[0].mxu0
  %v513 = vadd.f32 %v391, %v512
  %514 = vmatprep.mubr.f32.mxu0 %v295
  %515 = vmatmul.mubr.f32.gmra.mrb[0].mxu0 %v294
  %v516 = vpop.f32.mrb[0].mxu0
  %v517 = vadd.f32 %v387, %v516
  %v518 = vpop.f32.mrb[0].mxu0
  %v519 = vadd.f32 %v391, %v518
  %520 = vmatprep.mubr.f32.mxu0 %v298
  %521 = vmatmul.mubr.f32.gmra.mrb[0].mxu0 %v297
  %v522 = vpop.f32.mrb[0].mxu0
  %v523 = vadd.f32 %v387, %v522
  %v524 = vpop.f32.mrb[0].mxu0
  %v525 = vadd.f32 %v391, %v524
  %526 = vmatprep.mubr.f32.mxu0 %v301
  %527 = vmatmul.mubr.f32.gmra.mrb[0].mxu0 %v300
  %v528 = vpop.f32.mrb[0].mxu0
  %v529 = vadd.f32 %v387, %v528
  %v530 = vpop.f32.mrb[0].mxu0
  %v531 = vadd.f32 %v391, %v530
  %532 = vmatprep.mubr.f32.mxu0 %v304
  %533 = vmatmul.mubr.f32.gmra.mrb[0].mxu0 %v303
  %v534 = vpop.f32.mrb[0].mxu0
  %v535 = vadd.f32 %v387, %v534
  %v536 = vpop.f32.mrb[0].mxu0
  %v537 = vadd.f32 %v391, %v536
  %538 = vdwg.mxu0
  %539 = vmatprep.subr.mxu0 %v371
  %540 = vmatpush1.msra.mxu0 %v370
  %541 = vmatprep.subr.mxu0 %v373
  %542 = vmatpush1.msra.mxu0 %v372
  %543 = vmatprep.subr.mxu0 %v375
  %544 = vmatpush1.msra.mxu0 %v374
  %545 = vmatprep.subr.mxu0 %v377
  %546 = vmatpush1.msra.mxu0 %v376
  %547 = vmatprep.subr.mxu0 %v379
  %548 = vmatpush1.msra.mxu0 %v378
  %549 = vmatprep.subr.mxu0 %v424
  %550 = vmatpush1.msra.mxu0 %v421
  %551 = vmatprep.subr.mxu0 0.0
  %552 = vmatpush1.msra.mxu0 0.0
  %553 = vmatprep.subr.mxu0 0.0
  %554 = vmatpush1.msra.mxu0 0.0
  %555 = vmatprep.subr.mxu0 0.0
  %556 = vmatpush1.msra.mxu0 0.0
  %557 = vmatprep.subr.mxu0 0.0
  %558 = vmatpush1.msra.mxu0 0.0
  %559 = vmatprep.subr.mxu0 0.0
  %560 = vmatpush1.msra.mxu0 0.0
  %561 = vmatprep.subr.mxu0 0.0
  %562 = vmatpush1.msra.mxu0 0.0
  %563 = vmatprep.subr.mxu0 0.0
  %564 = vmatpush1.msra.mxu0 0.0
  %565 = vmatprep.subr.mxu0 0.0
  %566 = vmatpush1.msra.mxu0 0.0
  %567 = vmatprep.subr.mxu0 0.0
  %568 = vmatpush1.msra.mxu0 0.0
  %569 = vmatprep.subr.mxu0 0.0
  %570 = vmatpush1.msra.mxu0 0.0
  %571 = vmatprep.subr.mxu0 0.0
  %572 = vmatpush1.msra.mxu0 0.0
  %573 = vmatprep.subr.mxu0 0.0
  %574 = vmatpush1.msra.mxu0 0.0
  %575 = vmatprep.subr.mxu0 0.0
  %576 = vmatpush1.msra.mxu0 0.0
  %577 = vmatprep.subr.mxu0 0.0
  %578 = vmatpush1.msra.mxu0 0.0
  %579 = vmatprep.subr.mxu0 0.0
  %580 = vmatpush1.msra.mxu0 0.0
  %581 = vmatprep.subr.mxu0 0.0
  %582 = vmatpush1.msra.mxu0 0.0
  %583 = vmatprep.subr.mxu0 0.0
  %584 = vmatpush1.msra.mxu0 0.0
  %585 = vmatprep.subr.mxu0 0.0
  %586 = vmatpush1.msra.mxu0 0.0
  %587 = vmatprep.subr.mxu0 0.0
  %588 = vmatpush1.msra.mxu0 0.0
  %589 = vmatprep.subr.mxu0 0.0
  %590 = vmatpush1.msra.mxu0 0.0
  %591 = vmatprep.subr.mxu0 0.0
  %592 = vmatpush1.msra.mxu0 0.0
  %593 = vmatprep.subr.mxu0 0.0
  %594 = vmatpush1.msra.mxu0 0.0
  %595 = vmatprep.subr.mxu0 0.0
  %596 = vmatpush1.msra.mxu0 0.0
  %597 = vmatprep.subr.mxu0 0.0
  %598 = vmatpush1.msra.mxu0 0.0
  %599 = vmatprep.subr.mxu0 0.0
  %600 = vmatpush1.msra.mxu0 0.0
  %601 = vmatprep.subr.mxu0 0.0
  %602 = vmatpush1.msra.mxu0 0.0
  %603 = vmatprep.mubr.f32.mxu0 0.0
  %604 = vmatmul.mubr.f32.gmra.mrb[0].mxu0 %v396
  %v605 = vpop.f32.mrb[0].mxu0
  %v606 = vadd.f32 %v493, %v605
  %v607 = vpop.f32.mrb[0].mxu0
  %v608 = vadd.f32 %v495, %v607
  %609 = vmatprep.mubr.f32.mxu0 0.0
  %610 = vmatmul.mubr.f32.gmra.mrb[0].mxu0 %v399
  %v611 = vpop.f32.mrb[0].mxu0
  %v612 = vadd.f32 %v499, %v611
  %v613 = vpop.f32.mrb[0].mxu0
  %v614 = vadd.f32 %v501, %v613
  %615 = vmatprep.mubr.f32.mxu0 0.0
  %616 = vmatmul.mubr.f32.gmra.mrb[0].mxu0 %v402
  %v617 = vpop.f32.mrb[0].mxu0
  %v618 = vadd.f32 %v505, %v617
  %v619 = vpop.f32.mrb[0].mxu0
  %v620 = vadd.f32 %v507, %v619
  %621 = vmatprep.mubr.f32.mxu0 0.0
  %622 = vmatmul.mubr.f32.gmra.mrb[0].mxu0 %v405
  %v623 = vpop.f32.mrb[0].mxu0
  %v624 = vadd.f32 %v511, %v623
  %v625 = vpop.f32.mrb[0].mxu0
  %v626 = vadd.f32 %v513, %v625
  %627 = vmatprep.mubr.f32.mxu0 0.0
  %628 = vmatmul.mubr.f32.gmra.mrb[0].mxu0 %v408
  %v629 = vpop.f32.mrb[0].mxu0
  %v630 = vadd.f32 %v517, %v629
  %v631 = vpop.f32.mrb[0].mxu0
  %v632 = vadd.f32 %v519, %v631
  %633 = vmatprep.mubr.f32.mxu0 0.0
  %634 = vmatmul.mubr.f32.gmra.mrb[0].mxu0 %v411
  %v635 = vpop.f32.mrb[0].mxu0
  %v636 = vadd.f32 %v523, %v635
  %v637 = vpop.f32.mrb[0].mxu0
  %v638 = vadd.f32 %v525, %v637
  %639 = vmatprep.mubr.f32.mxu0 0.0
  %640 = vmatmul.mubr.f32.gmra.mrb[0].mxu0 %v414
  %v641 = vpop.f32.mrb[0].mxu0
  %v642 = vadd.f32 %v529, %v641
  %v643 = vpop.f32.mrb[0].mxu0
  %v644 = vadd.f32 %v531, %v643
  %645 = vmatprep.mubr.f32.mxu0 0.0
  %646 = vmatmul.mubr.f32.gmra.mrb[0].mxu0 %v417
  %v647 = vpop.f32.mrb[0].mxu0
  %v648 = vadd.f32 %v535, %v647
  %v649 = vpop.f32.mrb[0].mxu0
  %v650 = vadd.f32 %v537, %v649
  %651 = vdwg.mxu0
  %v653 = vsel %vm160, 0.0, 0
  %655 = vmatprep.subr.mxu0 %v128
  %656 = vmatpush1.msra.mxu0 %v126
  %657 = vmatprep.subr.mxu0 %v134
  %658 = vmatpush1.msra.mxu0 %v132
  %659 = vmatprep.subr.mxu0 %v140
  %660 = vmatpush1.msra.mxu0 %v138
  %661 = vmatprep.subr.mxu0 %v146
  %662 = vmatpush1.msra.mxu0 %v144
  %663 = vmatprep.subr.mxu0 0.0
  %664 = vmatpush1.msra.mxu0 0.0
  %665 = vmatprep.subr.mxu0 0.0
  %666 = vmatpush1.msra.mxu0 0.0
  %667 = vmatprep.subr.mxu0 0.0
  %668 = vmatpush1.msra.mxu0 0.0
  %669 = vmatprep.subr.mxu0 0.0
  %670 = vmatpush1.msra.mxu0 0.0
  %671 = vmatprep.subr.mxu0 0.0
  %672 = vmatpush1.msra.mxu0 0.0
  %673 = vmatprep.subr.mxu0 0.0
  %674 = vmatpush1.msra.mxu0 0.0
  %675 = vmatprep.subr.mxu0 0.0
  %676 = vmatpush1.msra.mxu0 0.0
  %677 = vmatprep.subr.mxu0 0.0
  %678 = vmatpush1.msra.mxu0 0.0
  %679 = vmatprep.subr.mxu0 0.0
  %680 = vmatpush1.msra.mxu0 0.0
  %681 = vmatprep.subr.mxu0 0.0
  %682 = vmatpush1.msra.mxu0 0.0
  %683 = vmatprep.subr.mxu0 0.0
  %684 = vmatpush1.msra.mxu0 0.0
  %685 = vmatprep.subr.mxu0 0.0
  %686 = vmatpush1.msra.mxu0 0.0
  %687 = vmatprep.subr.mxu0 0.0
  %688 = vmatpush1.msra.mxu0 0.0
  %689 = vmatprep.subr.mxu0 0.0
  %690 = vmatpush1.msra.mxu0 0.0
  %691 = vmatprep.subr.mxu0 0.0
  %692 = vmatpush1.msra.mxu0 0.0
  %693 = vmatprep.subr.mxu0 0.0
  %694 = vmatpush1.msra.mxu0 0.0
  %695 = vmatprep.subr.mxu0 0.0
  %696 = vmatpush1.msra.mxu0 0.0
  %697 = vmatprep.subr.mxu0 0.0
  %698 = vmatpush1.msra.mxu0 0.0
  %699 = vmatprep.subr.mxu0 0.0
  %700 = vmatpush1.msra.mxu0 0.0
  %701 = vmatprep.subr.mxu0 0.0
  %702 = vmatpush1.msra.mxu0 0.0
  %703 = vmatprep.subr.mxu0 0.0
  %704 = vmatpush1.msra.mxu0 0.0
  %705 = vmatprep.subr.mxu0 0.0
  %706 = vmatpush1.msra.mxu0 0.0
  %707 = vmatprep.subr.mxu0 0.0
  %708 = vmatpush1.msra.mxu0 0.0
  %709 = vmatprep.subr.mxu0 0.0
  %710 = vmatpush1.msra.mxu0 0.0
  %711 = vmatprep.subr.mxu0 0.0
  %712 = vmatpush1.msra.mxu0 0.0
  %713 = vmatprep.subr.mxu0 0.0
  %714 = vmatpush1.msra.mxu0 0.0
  %715 = vmatprep.subr.mxu0 0.0
  %716 = vmatpush1.msra.mxu0 0.0
  %717 = vmatprep.subr.mxu0 0.0
  %718 = vmatpush1.msra.mxu0 0.0
  %719 = vmatprep.mubr.f32.mxu0 0.0
  %720 = vmatmul.mubr.f32.gmra.mrb[0].mxu0 %v653
  %v721 = vpop.f32.mrb[0].mxu0
  %v722 = vadd.f32 0.0, %v721
  %v723 = vpop.f32.mrb[0].mxu0
  %724 = vmatprep.mubr.f32.mxu0 0.0
  %725 = vmatmul.mubr.f32.gmra.mrb[0].mxu0 %v653
  %v726 = vpop.f32.mrb[0].mxu0
  %v727 = vpop.f32.mrb[0].mxu0
  %v728 = vadd.f32 0.0, %v727
  %729 = vdwg.mxu0
  %v730 = vadd.f32 %v606, %v722
  %v731 = vadd.f32 %v650, %v728
  %v732 = vxor.u32 %v730, 2147483648
  %v733 = vxor.u32 %v731, 2147483648
  %v734 = vmul.f32 %v732, 1.442695
  %v735 = vpow.pop %v734
  %v736 = vmul.f32 %v733, 1.442695
  %v737 = vpow.pop %v736
  %v738 = vadd.f32 %v735, 1.0
  %v739 = vadd.f32 %v737, 1.0
  %v740 = vrcp.pop %v738
  %v741 = vmul.f32 1.0, %v740
  %v742 = vrcp.pop %v739
  %v743 = vmul.f32 1.0, %v742
  %v744 = vtanh.pop %v730
  %v745 = vtanh.pop %v731
  %748 = vrot.lane.b32.xlu0 %v744, 64
  %v749 = vpop.permute.xlu0 %748
  %750 = vrot.lane.b32.xlu0 %v745, 64
  %v751 = vpop.permute.xlu0 %750
  %v754 = vmul.f32 %v741, %v749
  %v755 = vmul.f32 %v743, %v751
  %v756 = vmul.f32 %v741, 0.0
  %v757 = vmul.f32 %v743, 0.0
  %760 = vrot.lane.b32.xlu0 %v756, 96
  %v761 = vpop.permute.xlu0 %760
  %762 = vrot.lane.b32.xlu0 %v757, 96
  %v763 = vpop.permute.xlu0 %762
  %v766 = vadd.f32 %v754, %v761
  %v767 = vadd.f32 %v755, %v763
  %v768 = vtanh.pop %v766
  %v769 = vtanh.pop %v767
  %772 = vrot.lane.b32.xlu0 %v768, 96
  %v773 = vpop.permute.xlu0 %772
  %774 = vrot.lane.b32.xlu0 %v769, 96
  %v775 = vpop.permute.xlu0 %774
  %v778 = vmul.f32 %v741, %v773
  %v779 = vmul.f32 %v743, %v775
  %781 = vrot.lane.b32.xlu0 %v778, 32
  %v782 = vpop.permute.xlu0 %781
  %784 = vst.msk [vmem:[#allocation2] sm:$0xff] %vm160, %v782
  %786 = vrot.lane.b32.xlu0 %v779, 32
  %v787 = vpop.permute.xlu0 %786
  %789 = vst.msk [vmem:[#allocation2 + $0x78] sm:$0xff] %vm160, %v787
  %v790 = vsel %vm160, %v782, 0
  %v792 = vsel %vm160, %v787, 0
  %794 = vmatprep.subr.mxu0 %v128
  %795 = vmatpush1.msra.mxu0 %v126
  %796 = vmatprep.subr.mxu0 %v134
  %797 = vmatpush1.msra.mxu0 %v132
  %798 = vmatprep.subr.mxu0 %v140
  %799 = vmatpush1.msra.mxu0 %v138
  %800 = vmatprep.subr.mxu0 %v146
  %801 = vmatpush1.msra.mxu0 %v144
  %802 = vmatprep.subr.mxu0 0.0
  %803 = vmatpush1.msra.mxu0 0.0
  %804 = vmatprep.subr.mxu0 0.0
  %805 = vmatpush1.msra.mxu0 0.0
  %806 = vmatprep.subr.mxu0 0.0
  %807 = vmatpush1.msra.mxu0 0.0
  %808 = vmatprep.subr.mxu0 0.0
  %809 = vmatpush1.msra.mxu0 0.0
  %810 = vmatprep.subr.mxu0 0.0
  %811 = vmatpush1.msra.mxu0 0.0
  %812 = vmatprep.subr.mxu0 0.0
  %813 = vmatpush1.msra.mxu0 0.0
  %814 = vmatprep.subr.mxu0 0.0
  %815 = vmatpush1.msra.mxu0 0.0
  %816 = vmatprep.subr.mxu0 0.0
  %817 = vmatpush1.msra.mxu0 0.0
  %818 = vmatprep.subr.mxu0 0.0
  %819 = vmatpush1.msra.mxu0 0.0
  %820 = vmatprep.subr.mxu0 0.0
  %821 = vmatpush1.msra.mxu0 0.0
  %822 = vmatprep.subr.mxu0 0.0
  %823 = vmatpush1.msra.mxu0 0.0
  %824 = vmatprep.subr.mxu0 0.0
  %825 = vmatpush1.msra.mxu0 0.0
  %826 = vmatprep.subr.mxu0 0.0
  %827 = vmatpush1.msra.mxu0 0.0
  %828 = vmatprep.subr.mxu0 0.0
  %829 = vmatpush1.msra.mxu0 0.0
  %830 = vmatprep.subr.mxu0 0.0
  %831 = vmatpush1.msra.mxu0 0.0
  %832 = vmatprep.subr.mxu0 0.0
  %833 = vmatpush1.msra.mxu0 0.0
  %834 = vmatprep.subr.mxu0 0.0
  %835 = vmatpush1.msra.mxu0 0.0
  %836 = vmatprep.subr.mxu0 0.0
  %837 = vmatpush1.msra.mxu0 0.0
  %838 = vmatprep.subr.mxu0 0.0
  %839 = vmatpush1.msra.mxu0 0.0
  %840 = vmatprep.subr.mxu0 0.0
  %841 = vmatpush1.msra.mxu0 0.0
  %842 = vmatprep.subr.mxu0 0.0
  %843 = vmatpush1.msra.mxu0 0.0
  %844 = vmatprep.subr.mxu0 0.0
  %845 = vmatpush1.msra.mxu0 0.0
  %846 = vmatprep.subr.mxu0 0.0
  %847 = vmatpush1.msra.mxu0 0.0
  %848 = vmatprep.subr.mxu0 0.0
  %849 = vmatpush1.msra.mxu0 0.0
  %850 = vmatprep.subr.mxu0 0.0
  %851 = vmatpush1.msra.mxu0 0.0
  %852 = vmatprep.subr.mxu0 0.0
  %853 = vmatpush1.msra.mxu0 0.0
  %854 = vmatprep.subr.mxu0 0.0
  %855 = vmatpush1.msra.mxu0 0.0
  %856 = vmatprep.subr.mxu0 0.0
  %857 = vmatpush1.msra.mxu0 0.0
  %858 = vmatprep.mubr.f32.mxu0 0.0
  %859 = vmatmul.mubr.f32.gmra.mrb[0].mxu0 %v790
  %v860 = vpop.f32.mrb[0].mxu0
  %v861 = vadd.f32 0.0, %v860
  %v862 = vpop.f32.mrb[0].mxu0
  %863 = vmatprep.mubr.f32.mxu0 0.0
  %864 = vmatmul.mubr.f32.gmra.mrb[0].mxu0 %v792
  %v865 = vpop.f32.mrb[0].mxu0
  %v866 = vpop.f32.mrb[0].mxu0
  %v867 = vadd.f32 0.0, %v866
  %868 = vdwg.mxu0
  %v869 = vadd.f32 %v612, %v861
  %v870 = vadd.f32 %v644, %v867
  %v871 = vxor.u32 %v869, 2147483648
  %v872 = vxor.u32 %v870, 2147483648
  %v873 = vmul.f32 %v871, 1.442695
  %v874 = vpow.pop %v873
  %v875 = vmul.f32 %v872, 1.442695
  %v876 = vpow.pop %v875
  %v877 = vadd.f32 %v874, 1.0
  %v878 = vadd.f32 %v876, 1.0
  %v879 = vrcp.pop %v877
  %v880 = vmul.f32 1.0, %v879
  %v881 = vrcp.pop %v878
  %v882 = vmul.f32 1.0, %v881
  %v883 = vtanh.pop %v869
  %v884 = vtanh.pop %v870
  %887 = vrot.lane.b32.xlu0 %v883, 64
  %v888 = vpop.permute.xlu0 %887
  %889 = vrot.lane.b32.xlu0 %v884, 64
  %v890 = vpop.permute.xlu0 %889
  %v893 = vmul.f32 %v880, %v888
  %v894 = vmul.f32 %v882, %v890
  %897 = vrot.lane.b32.xlu0 %v766, 32
  %v898 = vpop.permute.xlu0 %897
  %899 = vrot.lane.b32.xlu0 %v767, 32
  %v900 = vpop.permute.xlu0 %899
  %v903 = vmul.f32 %v880, %v898
  %v904 = vmul.f32 %v882, %v900
  %907 = vrot.lane.b32.xlu0 %v903, 96
  %v908 = vpop.permute.xlu0 %907
  %909 = vrot.lane.b32.xlu0 %v904, 96
  %v910 = vpop.permute.xlu0 %909
  %v913 = vadd.f32 %v893, %v908
  %v914 = vadd.f32 %v894, %v910
  %v915 = vtanh.pop %v913
  %v916 = vtanh.pop %v914
  %919 = vrot.lane.b32.xlu0 %v915, 96
  %v920 = vpop.permute.xlu0 %919
  %921 = vrot.lane.b32.xlu0 %v916, 96
  %v922 = vpop.permute.xlu0 %921
  %v925 = vmul.f32 %v880, %v920
  %v926 = vmul.f32 %v882, %v922
  %928 = vrot.lane.b32.xlu0 %v925, 32
  %v929 = vpop.permute.xlu0 %928
  %931 = vst.msk [vmem:[#allocation2 + $0x8] sm:$0xff] %vm160, %v929
  %933 = vrot.lane.b32.xlu0 %v926, 32
  %v934 = vpop.permute.xlu0 %933
  %936 = vst.msk [vmem:[#allocation2 + $0x70] sm:$0xff] %vm160, %v934
  %v937 = vsel %vm160, %v929, 0
  %v939 = vsel %vm160, %v934, 0
  %941 = vmatprep.subr.mxu0 %v128
  %942 = vmatpush1.msra.mxu0 %v126
  %943 = vmatprep.subr.mxu0 %v134
  %944 = vmatpush1.msra.mxu0 %v132
  %945 = vmatprep.subr.mxu0 %v140
  %946 = vmatpush1.msra.mxu0 %v138
  %947 = vmatprep.subr.mxu0 %v146
  %948 = vmatpush1.msra.mxu0 %v144
  %949 = vmatprep.subr.mxu0 0.0
  %950 = vmatpush1.msra.mxu0 0.0
  %951 = vmatprep.subr.mxu0 0.0
  %952 = vmatpush1.msra.mxu0 0.0
  %953 = vmatprep.subr.mxu0 0.0
  %954 = vmatpush1.msra.mxu0 0.0
  %955 = vmatprep.subr.mxu0 0.0
  %956 = vmatpush1.msra.mxu0 0.0
  %957 = vmatprep.subr.mxu0 0.0
  %958 = vmatpush1.msra.mxu0 0.0
  %959 = vmatprep.subr.mxu0 0.0
  %960 = vmatpush1.msra.mxu0 0.0
  %961 = vmatprep.subr.mxu0 0.0
  %962 = vmatpush1.msra.mxu0 0.0
  %963 = vmatprep.subr.mxu0 0.0
  %964 = vmatpush1.msra.mxu0 0.0
  %965 = vmatprep.subr.mxu0 0.0
  %966 = vmatpush1.msra.mxu0 0.0
  %967 = vmatprep.subr.mxu0 0.0
  %968 = vmatpush1.msra.mxu0 0.0
  %969 = vmatprep.subr.mxu0 0.0
  %970 = vmatpush1.msra.mxu0 0.0
  %971 = vmatprep.subr.mxu0 0.0
  %972 = vmatpush1.msra.mxu0 0.0
  %973 = vmatprep.subr.mxu0 0.0
  %974 = vmatpush1.msra.mxu0 0.0
  %975 = vmatprep.subr.mxu0 0.0
  %976 = vmatpush1.msra.mxu0 0.0
  %977 = vmatprep.subr.mxu0 0.0
  %978 = vmatpush1.msra.mxu0 0.0
  %979 = vmatprep.subr.mxu0 0.0
  %980 = vmatpush1.msra.mxu0 0.0
  %981 = vmatprep.subr.mxu0 0.0
  %982 = vmatpush1.msra.mxu0 0.0
  %983 = vmatprep.subr.mxu0 0.0
  %984 = vmatpush1.msra.mxu0 0.0
  %985 = vmatprep.subr.mxu0 0.0
  %986 = vmatpush1.msra.mxu0 0.0
  %987 = vmatprep.subr.mxu0 0.0
  %988 = vmatpush1.msra.mxu0 0.0
  %989 = vmatprep.subr.mxu0 0.0
  %990 = vmatpush1.msra.mxu0 0.0
  %991 = vmatprep.subr.mxu0 0.0
  %992 = vmatpush1.msra.mxu0 0.0
  %993 = vmatprep.subr.mxu0 0.0
  %994 = vmatpush1.msra.mxu0 0.0
  %995 = vmatprep.subr.mxu0 0.0
  %996 = vmatpush1.msra.mxu0 0.0
  %997 = vmatprep.subr.mxu0 0.0
  %998 = vmatpush1.msra.mxu0 0.0
  %999 = vmatprep.subr.mxu0 0.0
  %1000 = vmatpush1.msra.mxu0 0.0
  %1001 = vmatprep.subr.mxu0 0.0
  %1002 = vmatpush1.msra.mxu0 0.0
  %1003 = vmatprep.subr.mxu0 0.0
  %1004 = vmatpush1.msra.mxu0 0.0
  %1005 = vmatprep.mubr.f32.mxu0 0.0
  %1006 = vmatmul.mubr.f32.gmra.mrb[0].mxu0 %v937
  %v1007 = vpop.f32.mrb[0].mxu0
  %v1008 = vadd.f32 0.0, %v1007
  %v1009 = vpop.f32.mrb[0].mxu0
  %1010 = vmatprep.mubr.f32.mxu0 0.0
  %1011 = vmatmul.mubr.f32.gmra.mrb[0].mxu0 %v939
  %v1012 = vpop.f32.mrb[0].mxu0
  %v1013 = vpop.f32.mrb[0].mxu0
  %v1014 = vadd.f32 0.0, %v1013
  %1015 = vdwg.mxu0
  %v1016 = vadd.f32 %v618, %v1008
  %v1017 = vadd.f32 %v638, %v1014
  %v1018 = vxor.u32 %v1016, 2147483648
  %v1019 = vxor.u32 %v1017, 2147483648
  %v1020 = vmul.f32 %v1018, 1.442695
  %v1021 = vpow.pop %v1020
  %v1022 = vmul.f32 %v1019, 1.442695
  %v1023 = vpow.pop %v1022
  %v1024 = vadd.f32 %v1021, 1.0
  %v1025 = vadd.f32 %v1023, 1.0
  %v1026 = vrcp.pop %v1024
  %v1027 = vmul.f32 1.0, %v1026
  %v1028 = vrcp.pop %v1025
  %v1029 = vmul.f32 1.0, %v1028
  %v1030 = vtanh.pop %v1016
  %v1031 = vtanh.pop %v1017
  %1034 = vrot.lane.b32.xlu0 %v1030, 64
  %v1035 = vpop.permute.xlu0 %1034
  %1036 = vrot.lane.b32.xlu0 %v1031, 64
  %v1037 = vpop.permute.xlu0 %1036
  %v1040 = vmul.f32 %v1027, %v1035
  %v1041 = vmul.f32 %v1029, %v1037
  %1044 = vrot.lane.b32.xlu0 %v913, 32
  %v1045 = vpop.permute.xlu0 %1044
  %1046 = vrot.lane.b32.xlu0 %v914, 32
  %v1047 = vpop.permute.xlu0 %1046
  %v1050 = vmul.f32 %v1027, %v1045
  %v1051 = vmul.f32 %v1029, %v1047
  %1054 = vrot.lane.b32.xlu0 %v1050, 96
  %v1055 = vpop.permute.xlu0 %1054
  %1056 = vrot.lane.b32.xlu0 %v1051, 96
  %v1057 = vpop.permute.xlu0 %1056
  %v1060 = vadd.f32 %v1040, %v1055
  %v1061 = vadd.f32 %v1041, %v1057
  %v1062 = vtanh.pop %v1060
  %v1063 = vtanh.pop %v1061
  %1066 = vrot.lane.b32.xlu0 %v1062, 96
  %v1067 = vpop.permute.xlu0 %1066
  %1068 = vrot.lane.b32.xlu0 %v1063, 96
  %v1069 = vpop.permute.xlu0 %1068
  %v1072 = vmul.f32 %v1027, %v1067
  %v1073 = vmul.f32 %v1029, %v1069
  %1075 = vrot.lane.b32.xlu0 %v1072, 32
  %v1076 = vpop.permute.xlu0 %1075
  %1078 = vst.msk [vmem:[#allocation2 + $0x10] sm:$0xff] %vm160, %v1076
  %1080 = vrot.lane.b32.xlu0 %v1073, 32
  %v1081 = vpop.permute.xlu0 %1080
  %1083 = vst.msk [vmem:[#allocation2 + $0x68] sm:$0xff] %vm160, %v1081
  %v1084 = vsel %vm160, %v1076, 0
  %v1086 = vsel %vm160, %v1081, 0
  %1088 = vmatprep.subr.mxu0 %v128
  %1089 = vmatpush1.msra.mxu0 %v126
  %1090 = vmatprep.subr.mxu0 %v134
  %1091 = vmatpush1.msra.mxu0 %v132
  %1092 = vmatprep.subr.mxu0 %v140
  %1093 = vmatpush1.msra.mxu0 %v138
  %1094 = vmatprep.subr.mxu0 %v146
  %1095 = vmatpush1.msra.mxu0 %v144
  %1096 = vmatprep.subr.mxu0 0.0
  %1097 = vmatpush1.msra.mxu0 0.0
  %1098 = vmatprep.subr.mxu0 0.0
  %1099 = vmatpush1.msra.mxu0 0.0
  %1100 = vmatprep.subr.mxu0 0.0
  %1101 = vmatpush1.msra.mxu0 0.0
  %1102 = vmatprep.subr.mxu0 0.0
  %1103 = vmatpush1.msra.mxu0 0.0
  %1104 = vmatprep.subr.mxu0 0.0
  %1105 = vmatpush1.msra.mxu0 0.0
  %1106 = vmatprep.subr.mxu0 0.0
  %1107 = vmatpush1.msra.mxu0 0.0
  %1108 = vmatprep.subr.mxu0 0.0
  %1109 = vmatpush1.msra.mxu0 0.0
  %1110 = vmatprep.subr.mxu0 0.0
  %1111 = vmatpush1.msra.mxu0 0.0
  %1112 = vmatprep.subr.mxu0 0.0
  %1113 = vmatpush1.msra.mxu0 0.0
  %1114 = vmatprep.subr.mxu0 0.0
  %1115 = vmatpush1.msra.mxu0 0.0
  %1116 = vmatprep.subr.mxu0 0.0
  %1117 = vmatpush1.msra.mxu0 0.0
  %1118 = vmatprep.subr.mxu0 0.0
  %1119 = vmatpush1.msra.mxu0 0.0
  %1120 = vmatprep.subr.mxu0 0.0
  %1121 = vmatpush1.msra.mxu0 0.0
  %1122 = vmatprep.subr.mxu0 0.0
  %1123 = vmatpush1.msra.mxu0 0.0
  %1124 = vmatprep.subr.mxu0 0.0
  %1125 = vmatpush1.msra.mxu0 0.0
  %1126 = vmatprep.subr.mxu0 0.0
  %1127 = vmatpush1.msra.mxu0 0.0
  %1128 = vmatprep.subr.mxu0 0.0
  %1129 = vmatpush1.msra.mxu0 0.0
  %1130 = vmatprep.subr.mxu0 0.0
  %1131 = vmatpush1.msra.mxu0 0.0
  %1132 = vmatprep.subr.mxu0 0.0
  %1133 = vmatpush1.msra.mxu0 0.0
  %1134 = vmatprep.subr.mxu0 0.0
  %1135 = vmatpush1.msra.mxu0 0.0
  %1136 = vmatprep.subr.mxu0 0.0
  %1137 = vmatpush1.msra.mxu0 0.0
  %1138 = vmatprep.subr.mxu0 0.0
  %1139 = vmatpush1.msra.mxu0 0.0
  %1140 = vmatprep.subr.mxu0 0.0
  %1141 = vmatpush1.msra.mxu0 0.0
  %1142 = vmatprep.subr.mxu0 0.0
  %1143 = vmatpush1.msra.mxu0 0.0
  %1144 = vmatprep.subr.mxu0 0.0
  %1145 = vmatpush1.msra.mxu0 0.0
  %1146 = vmatprep.subr.mxu0 0.0
  %1147 = vmatpush1.msra.mxu0 0.0
  %1148 = vmatprep.subr.mxu0 0.0
  %1149 = vmatpush1.msra.mxu0 0.0
  %1150 = vmatprep.subr.mxu0 0.0
  %1151 = vmatpush1.msra.mxu0 0.0
  %1152 = vmatprep.mubr.f32.mxu0 0.0
  %1153 = vmatmul.mubr.f32.gmra.mrb[0].mxu0 %v1084
  %v1154 = vpop.f32.mrb[0].mxu0
  %v1155 = vadd.f32 0.0, %v1154
  %v1156 = vpop.f32.mrb[0].mxu0
  %1157 = vmatprep.mubr.f32.mxu0 0.0
  %1158 = vmatmul.mubr.f32.gmra.mrb[0].mxu0 %v1086
  %v1159 = vpop.f32.mrb[0].mxu0
  %v1160 = vpop.f32.mrb[0].mxu0
  %v1161 = vadd.f32 0.0, %v1160
  %1162 = vdwg.mxu0
  %v1163 = vadd.f32 %v624, %v1155
  %v1164 = vadd.f32 %v632, %v1161
  %v1165 = vxor.u32 %v1163, 2147483648
  %v1166 = vxor.u32 %v1164, 2147483648
  %v1167 = vmul.f32 %v1165, 1.442695
  %v1168 = vpow.pop %v1167
  %v1169 = vmul.f32 %v1166, 1.442695
  %v1170 = vpow.pop %v1169
  %v1171 = vadd.f32 %v1168, 1.0
  %v1172 = vadd.f32 %v1170, 1.0
  %v1173 = vrcp.pop %v1171
  %v1174 = vmul.f32 1.0, %v1173
  %v1175 = vrcp.pop %v1172
  %v1176 = vmul.f32 1.0, %v1175
  %v1177 = vtanh.pop %v1163
  %v1178 = vtanh.pop %v1164
  %1181 = vrot.lane.b32.xlu0 %v1177, 64
  %v1182 = vpop.permute.xlu0 %1181
  %1183 = vrot.lane.b32.xlu0 %v1178, 64
  %v1184 = vpop.permute.xlu0 %1183
  %v1187 = vmul.f32 %v1174, %v1182
  %v1188 = vmul.f32 %v1176, %v1184
  %1191 = vrot.lane.b32.xlu0 %v1060, 32
  %v1192 = vpop.permute.xlu0 %1191
  %1193 = vrot.lane.b32.xlu0 %v1061, 32
  %v1194 = vpop.permute.xlu0 %1193
  %v1197 = vmul.f32 %v1174, %v1192
  %v1198 = vmul.f32 %v1176, %v1194
  %1201 = vrot.lane.b32.xlu0 %v1197, 96
  %v1202 = vpop.permute.xlu0 %1201
  %1203 = vrot.lane.b32.xlu0 %v1198, 96
  %v1204 = vpop.permute.xlu0 %1203
  %v1207 = vadd.f32 %v1187, %v1202
  %v1208 = vadd.f32 %v1188, %v1204
  %v1209 = vtanh.pop %v1207
  %v1210 = vtanh.pop %v1208
  %1213 = vrot.lane.b32.xlu0 %v1209, 96
  %v1214 = vpop.permute.xlu0 %1213
  %1215 = vrot.lane.b32.xlu0 %v1210, 96
  %v1216 = vpop.permute.xlu0 %1215
  %v1219 = vmul.f32 %v1174, %v1214
  %v1220 = vmul.f32 %v1176, %v1216
  %1222 = vrot.lane.b32.xlu0 %v1219, 32
  %v1223 = vpop.permute.xlu0 %1222
  %1225 = vst.msk [vmem:[#allocation2 + $0x18] sm:$0xff] %vm160, %v1223
  %1227 = vrot.lane.b32.xlu0 %v1220, 32
  %v1228 = vpop.permute.xlu0 %1227
  %1230 = vst.msk [vmem:[#allocation2 + $0x60] sm:$0xff] %vm160, %v1228
  %v1231 = vsel %vm160, %v1223, 0
  %v1233 = vsel %vm160, %v1228, 0
  %1235 = vmatprep.subr.mxu0 %v128
  %1236 = vmatpush1.msra.mxu0 %v126
  %1237 = vmatprep.subr.mxu0 %v134
  %1238 = vmatpush1.msra.mxu0 %v132
  %1239 = vmatprep.subr.mxu0 %v140
  %1240 = vmatpush1.msra.mxu0 %v138
  %1241 = vmatprep.subr.mxu0 %v146
  %1242 = vmatpush1.msra.mxu0 %v144
  %1243 = vmatprep.subr.mxu0 0.0
  %1244 = vmatpush1.msra.mxu0 0.0
  %1245 = vmatprep.subr.mxu0 0.0
  %1246 = vmatpush1.msra.mxu0 0.0
  %1247 = vmatprep.subr.mxu0 0.0
  %1248 = vmatpush1.msra.mxu0 0.0
  %1249 = vmatprep.subr.mxu0 0.0
  %1250 = vmatpush1.msra.mxu0 0.0
  %1251 = vmatprep.subr.mxu0 0.0
  %1252 = vmatpush1.msra.mxu0 0.0
  %1253 = vmatprep.subr.mxu0 0.0
  %1254 = vmatpush1.msra.mxu0 0.0
  %1255 = vmatprep.subr.mxu0 0.0
  %1256 = vmatpush1.msra.mxu0 0.0
  %1257 = vmatprep.subr.mxu0 0.0
  %1258 = vmatpush1.msra.mxu0 0.0
  %1259 = vmatprep.subr.mxu0 0.0
  %1260 = vmatpush1.msra.mxu0 0.0
  %1261 = vmatprep.subr.mxu0 0.0
  %1262 = vmatpush1.msra.mxu0 0.0
  %1263 = vmatprep.subr.mxu0 0.0
  %1264 = vmatpush1.msra.mxu0 0.0
  %1265 = vmatprep.subr.mxu0 0.0
  %1266 = vmatpush1.msra.mxu0 0.0
  %1267 = vmatprep.subr.mxu0 0.0
  %1268 = vmatpush1.msra.mxu0 0.0
  %1269 = vmatprep.subr.mxu0 0.0
  %1270 = vmatpush1.msra.mxu0 0.0
  %1271 = vmatprep.subr.mxu0 0.0
  %1272 = vmatpush1.msra.mxu0 0.0
  %1273 = vmatprep.subr.mxu0 0.0
  %1274 = vmatpush1.msra.mxu0 0.0
  %1275 = vmatprep.subr.mxu0 0.0
  %1276 = vmatpush1.msra.mxu0 0.0
  %1277 = vmatprep.subr.mxu0 0.0
  %1278 = vmatpush1.msra.mxu0 0.0
  %1279 = vmatprep.subr.mxu0 0.0
  %1280 = vmatpush1.msra.mxu0 0.0
  %1281 = vmatprep.subr.mxu0 0.0
  %1282 = vmatpush1.msra.mxu0 0.0
  %1283 = vmatprep.subr.mxu0 0.0
  %1284 = vmatpush1.msra.mxu0 0.0
  %1285 = vmatprep.subr.mxu0 0.0
  %1286 = vmatpush1.msra.mxu0 0.0
  %1287 = vmatprep.subr.mxu0 0.0
  %1288 = vmatpush1.msra.mxu0 0.0
  %1289 = vmatprep.subr.mxu0 0.0
  %1290 = vmatpush1.msra.mxu0 0.0
  %1291 = vmatprep.subr.mxu0 0.0
  %1292 = vmatpush1.msra.mxu0 0.0
  %1293 = vmatprep.subr.mxu0 0.0
  %1294 = vmatpush1.msra.mxu0 0.0
  %1295 = vmatprep.subr.mxu0 0.0
  %1296 = vmatpush1.msra.mxu0 0.0
  %1297 = vmatprep.subr.mxu0 0.0
  %1298 = vmatpush1.msra.mxu0 0.0
  %1299 = vmatprep.mubr.f32.mxu0 0.0
  %1300 = vmatmul.mubr.f32.gmra.mrb[0].mxu0 %v1231
  %v1301 = vpop.f32.mrb[0].mxu0
  %v1302 = vadd.f32 0.0, %v1301
  %v1303 = vpop.f32.mrb[0].mxu0
  %1304 = vmatprep.mubr.f32.mxu0 0.0
  %1305 = vmatmul.mubr.f32.gmra.mrb[0].mxu0 %v1233
  %v1306 = vpop.f32.mrb[0].mxu0
  %v1307 = vpop.f32.mrb[0].mxu0
  %v1308 = vadd.f32 0.0, %v1307
  %1309 = vdwg.mxu0
  %v1310 = vadd.f32 %v630, %v1302
  %v1311 = vadd.f32 %v626, %v1308
  %v1312 = vxor.u32 %v1310, 2147483648
  %v1313 = vxor.u32 %v1311, 2147483648
  %v1314 = vmul.f32 %v1312, 1.442695
  %v1315 = vpow.pop %v1314
  %v1316 = vmul.f32 %v1313, 1.442695
  %v1317 = vpow.pop %v1316
  %v1318 = vadd.f32 %v1315, 1.0
  %v1319 = vadd.f32 %v1317, 1.0
  %v1320 = vrcp.pop %v1318
  %v1321 = vmul.f32 1.0, %v1320
  %v1322 = vrcp.pop %v1319
  %v1323 = vmul.f32 1.0, %v1322
  %v1324 = vtanh.pop %v1310
  %v1325 = vtanh.pop %v1311
  %1328 = vrot.lane.b32.xlu0 %v1324, 64
  %v1329 = vpop.permute.xlu0 %1328
  %1330 = vrot.lane.b32.xlu0 %v1325, 64
  %v1331 = vpop.permute.xlu0 %1330
  %v1334 = vmul.f32 %v1321, %v1329
  %v1335 = vmul.f32 %v1323, %v1331
  %1338 = vrot.lane.b32.xlu0 %v1207, 32
  %v1339 = vpop.permute.xlu0 %1338
  %1340 = vrot.lane.b32.xlu0 %v1208, 32
  %v1341 = vpop.permute.xlu0 %1340
  %v1344 = vmul.f32 %v1321, %v1339
  %v1345 = vmul.f32 %v1323, %v1341
  %1348 = vrot.lane.b32.xlu0 %v1344, 96
  %v1349 = vpop.permute.xlu0 %1348
  %1350 = vrot.lane.b32.xlu0 %v1345, 96
  %v1351 = vpop.permute.xlu0 %1350
  %v1354 = vadd.f32 %v1334, %v1349
  %v1355 = vadd.f32 %v1335, %v1351
  %v1356 = vtanh.pop %v1354
  %v1357 = vtanh.pop %v1355
  %1360 = vrot.lane.b32.xlu0 %v1356, 96
  %v1361 = vpop.permute.xlu0 %1360
  %1362 = vrot.lane.b32.xlu0 %v1357, 96
  %v1363 = vpop.permute.xlu0 %1362
  %v1366 = vmul.f32 %v1321, %v1361
  %v1367 = vmul.f32 %v1323, %v1363
  %1369 = vrot.lane.b32.xlu0 %v1366, 32
  %v1370 = vpop.permute.xlu0 %1369
  %1372 = vst.msk [vmem:[#allocation2 + $0x20] sm:$0xff] %vm160, %v1370
  %1374 = vrot.lane.b32.xlu0 %v1367, 32
  %v1375 = vpop.permute.xlu0 %1374
  %1377 = vst.msk [vmem:[#allocation2 + $0x58] sm:$0xff] %vm160, %v1375
  %v1378 = vsel %vm160, %v1370, 0
  %v1380 = vsel %vm160, %v1375, 0
  %1382 = vmatprep.subr.mxu0 %v128
  %1383 = vmatpush1.msra.mxu0 %v126
  %1384 = vmatprep.subr.mxu0 %v134
  %1385 = vmatpush1.msra.mxu0 %v132
  %1386 = vmatprep.subr.mxu0 %v140
  %1387 = vmatpush1.msra.mxu0 %v138
  %1388 = vmatprep.subr.mxu0 %v146
  %1389 = vmatpush1.msra.mxu0 %v144
  %1390 = vmatprep.subr.mxu0 0.0
  %1391 = vmatpush1.msra.mxu0 0.0
  %1392 = vmatprep.subr.mxu0 0.0
  %1393 = vmatpush1.msra.mxu0 0.0
  %1394 = vmatprep.subr.mxu0 0.0
  %1395 = vmatpush1.msra.mxu0 0.0
  %1396 = vmatprep.subr.mxu0 0.0
  %1397 = vmatpush1.msra.mxu0 0.0
  %1398 = vmatprep.subr.mxu0 0.0
  %1399 = vmatpush1.msra.mxu0 0.0
  %1400 = vmatprep.subr.mxu0 0.0
  %1401 = vmatpush1.msra.mxu0 0.0
  %1402 = vmatprep.subr.mxu0 0.0
  %1403 = vmatpush1.msra.mxu0 0.0
  %1404 = vmatprep.subr.mxu0 0.0
  %1405 = vmatpush1.msra.mxu0 0.0
  %1406 = vmatprep.subr.mxu0 0.0
  %1407 = vmatpush1.msra.mxu0 0.0
  %1408 = vmatprep.subr.mxu0 0.0
  %1409 = vmatpush1.msra.mxu0 0.0
  %1410 = vmatprep.subr.mxu0 0.0
  %1411 = vmatpush1.msra.mxu0 0.0
  %1412 = vmatprep.subr.mxu0 0.0
  %1413 = vmatpush1.msra.mxu0 0.0
  %1414 = vmatprep.subr.mxu0 0.0
  %1415 = vmatpush1.msra.mxu0 0.0
  %1416 = vmatprep.subr.mxu0 0.0
  %1417 = vmatpush1.msra.mxu0 0.0
  %1418 = vmatprep.subr.mxu0 0.0
  %1419 = vmatpush1.msra.mxu0 0.0
  %1420 = vmatprep.subr.mxu0 0.0
  %1421 = vmatpush1.msra.mxu0 0.0
  %1422 = vmatprep.subr.mxu0 0.0
  %1423 = vmatpush1.msra.mxu0 0.0
  %1424 = vmatprep.subr.mxu0 0.0
  %1425 = vmatpush1.msra.mxu0 0.0
  %1426 = vmatprep.subr.mxu0 0.0
  %1427 = vmatpush1.msra.mxu0 0.0
  %1428 = vmatprep.subr.mxu0 0.0
  %1429 = vmatpush1.msra.mxu0 0.0
  %1430 = vmatprep.subr.mxu0 0.0
  %1431 = vmatpush1.msra.mxu0 0.0
  %1432 = vmatprep.subr.mxu0 0.0
  %1433 = vmatpush1.msra.mxu0 0.0
  %1434 = vmatprep.subr.mxu0 0.0
  %1435 = vmatpush1.msra.mxu0 0.0
  %1436 = vmatprep.subr.mxu0 0.0
  %1437 = vmatpush1.msra.mxu0 0.0
  %1438 = vmatprep.subr.mxu0 0.0
  %1439 = vmatpush1.msra.mxu0 0.0
  %1440 = vmatprep.subr.mxu0 0.0
  %1441 = vmatpush1.msra.mxu0 0.0
  %1442 = vmatprep.subr.mxu0 0.0
  %1443 = vmatpush1.msra.mxu0 0.0
  %1444 = vmatprep.subr.mxu0 0.0
  %1445 = vmatpush1.msra.mxu0 0.0
  %1446 = vmatprep.mubr.f32.mxu0 0.0
  %1447 = vmatmul.mubr.f32.gmra.mrb[0].mxu0 %v1378
  %v1448 = vpop.f32.mrb[0].mxu0
  %v1449 = vadd.f32 0.0, %v1448
  %v1450 = vpop.f32.mrb[0].mxu0
  %1451 = vmatprep.mubr.f32.mxu0 0.0
  %1452 = vmatmul.mubr.f32.gmra.mrb[0].mxu0 %v1380
  %v1453 = vpop.f32.mrb[0].mxu0
  %v1454 = vpop.f32.mrb[0].mxu0
  %v1455 = vadd.f32 0.0, %v1454
  %1456 = vdwg.mxu0
  %v1457 = vadd.f32 %v636, %v1449
  %v1458 = vadd.f32 %v620, %v1455
  %v1459 = vxor.u32 %v1457, 2147483648
  %v1460 = vxor.u32 %v1458, 2147483648
  %v1461 = vmul.f32 %v1459, 1.442695
  %v1462 = vpow.pop %v1461
  %v1463 = vmul.f32 %v1460, 1.442695
  %v1464 = vpow.pop %v1463
  %v1465 = vadd.f32 %v1462, 1.0
  %v1466 = vadd.f32 %v1464, 1.0
  %v1467 = vrcp.pop %v1465
  %v1468 = vmul.f32 1.0, %v1467
  %v1469 = vrcp.pop %v1466
  %v1470 = vmul.f32 1.0, %v1469
  %v1471 = vtanh.pop %v1457
  %v1472 = vtanh.pop %v1458
  %1475 = vrot.lane.b32.xlu0 %v1471, 64
  %v1476 = vpop.permute.xlu0 %1475
  %1477 = vrot.lane.b32.xlu0 %v1472, 64
  %v1478 = vpop.permute.xlu0 %1477
  %v1481 = vmul.f32 %v1468, %v1476
  %v1482 = vmul.f32 %v1470, %v1478
  %1485 = vrot.lane.b32.xlu0 %v1354, 32
  %v1486 = vpop.permute.xlu0 %1485
  %1487 = vrot.lane.b32.xlu0 %v1355, 32
  %v1488 = vpop.permute.xlu0 %1487
  %v1491 = vmul.f32 %v1468, %v1486
  %v1492 = vmul.f32 %v1470, %v1488
  %1495 = vrot.lane.b32.xlu0 %v1491, 96
  %v1496 = vpop.permute.xlu0 %1495
  %1497 = vrot.lane.b32.xlu0 %v1492, 96
  %v1498 = vpop.permute.xlu0 %1497
  %v1501 = vadd.f32 %v1481, %v1496
  %v1502 = vadd.f32 %v1482, %v1498
  %v1503 = vtanh.pop %v1501
  %v1504 = vtanh.pop %v1502
  %1507 = vrot.lane.b32.xlu0 %v1503, 96
  %v1508 = vpop.permute.xlu0 %1507
  %1509 = vrot.lane.b32.xlu0 %v1504, 96
  %v1510 = vpop.permute.xlu0 %1509
  %v1513 = vmul.f32 %v1468, %v1508
  %v1514 = vmul.f32 %v1470, %v1510
  %1516 = vrot.lane.b32.xlu0 %v1513, 32
  %v1517 = vpop.permute.xlu0 %1516
  %1519 = vst.msk [vmem:[#allocation2 + $0x28] sm:$0xff] %vm160, %v1517
  %1521 = vrot.lane.b32.xlu0 %v1514, 32
  %v1522 = vpop.permute.xlu0 %1521
  %1524 = vst.msk [vmem:[#allocation2 + $0x50] sm:$0xff] %vm160, %v1522
  %v1525 = vsel %vm160, %v1517, 0
  %v1527 = vsel %vm160, %v1522, 0
  %1529 = vmatprep.subr.mxu0 %v128
  %1530 = vmatpush1.msra.mxu0 %v126
  %1531 = vmatprep.subr.mxu0 %v134
  %1532 = vmatpush1.msra.mxu0 %v132
  %1533 = vmatprep.subr.mxu0 %v140
  %1534 = vmatpush1.msra.mxu0 %v138
  %1535 = vmatprep.subr.mxu0 %v146
  %1536 = vmatpush1.msra.mxu0 %v144
  %1537 = vmatprep.subr.mxu0 0.0
  %1538 = vmatpush1.msra.mxu0 0.0
  %1539 = vmatprep.subr.mxu0 0.0
  %1540 = vmatpush1.msra.mxu0 0.0
  %1541 = vmatprep.subr.mxu0 0.0
  %1542 = vmatpush1.msra.mxu0 0.0
  %1543 = vmatprep.subr.mxu0 0.0
  %1544 = vmatpush1.msra.mxu0 0.0
  %1545 = vmatprep.subr.mxu0 0.0
  %1546 = vmatpush1.msra.mxu0 0.0
  %1547 = vmatprep.subr.mxu0 0.0
  %1548 = vmatpush1.msra.mxu0 0.0
  %1549 = vmatprep.subr.mxu0 0.0
  %1550 = vmatpush1.msra.mxu0 0.0
  %1551 = vmatprep.subr.mxu0 0.0
  %1552 = vmatpush1.msra.mxu0 0.0
  %1553 = vmatprep.subr.mxu0 0.0
  %1554 = vmatpush1.msra.mxu0 0.0
  %1555 = vmatprep.subr.mxu0 0.0
  %1556 = vmatpush1.msra.mxu0 0.0
  %1557 = vmatprep.subr.mxu0 0.0
  %1558 = vmatpush1.msra.mxu0 0.0
  %1559 = vmatprep.subr.mxu0 0.0
  %1560 = vmatpush1.msra.mxu0 0.0
  %1561 = vmatprep.subr.mxu0 0.0
  %1562 = vmatpush1.msra.mxu0 0.0
  %1563 = vmatprep.subr.mxu0 0.0
  %1564 = vmatpush1.msra.mxu0 0.0
  %1565 = vmatprep.subr.mxu0 0.0
  %1566 = vmatpush1.msra.mxu0 0.0
  %1567 = vmatprep.subr.mxu0 0.0
  %1568 = vmatpush1.msra.mxu0 0.0
  %1569 = vmatprep.subr.mxu0 0.0
  %1570 = vmatpush1.msra.mxu0 0.0
  %1571 = vmatprep.subr.mxu0 0.0
  %1572 = vmatpush1.msra.mxu0 0.0
  %1573 = vmatprep.subr.mxu0 0.0
  %1574 = vmatpush1.msra.mxu0 0.0
  %1575 = vmatprep.subr.mxu0 0.0
  %1576 = vmatpush1.msra.mxu0 0.0
  %1577 = vmatprep.subr.mxu0 0.0
  %1578 = vmatpush1.msra.mxu0 0.0
  %1579 = vmatprep.subr.mxu0 0.0
  %1580 = vmatpush1.msra.mxu0 0.0
  %1581 = vmatprep.subr.mxu0 0.0
  %1582 = vmatpush1.msra.mxu0 0.0
  %1583 = vmatprep.subr.mxu0 0.0
  %1584 = vmatpush1.msra.mxu0 0.0
  %1585 = vmatprep.subr.mxu0 0.0
  %1586 = vmatpush1.msra.mxu0 0.0
  %1587 = vmatprep.subr.mxu0 0.0
  %1588 = vmatpush1.msra.mxu0 0.0
  %1589 = vmatprep.subr.mxu0 0.0
  %1590 = vmatpush1.msra.mxu0 0.0
  %1591 = vmatprep.subr.mxu0 0.0
  %1592 = vmatpush1.msra.mxu0 0.0
  %1593 = vmatprep.mubr.f32.mxu0 0.0
  %1594 = vmatmul.mubr.f32.gmra.mrb[0].mxu0 %v1525
  %v1595 = vpop.f32.mrb[0].mxu0
  %v1596 = vadd.f32 0.0, %v1595
  %v1597 = vpop.f32.mrb[0].mxu0
  %1598 = vmatprep.mubr.f32.mxu0 0.0
  %1599 = vmatmul.mubr.f32.gmra.mrb[0].mxu0 %v1527
  %v1600 = vpop.f32.mrb[0].mxu0
  %v1601 = vpop.f32.mrb[0].mxu0
  %v1602 = vadd.f32 0.0, %v1601
  %1603 = vdwg.mxu0
  %v1604 = vadd.f32 %v642, %v1596
  %v1605 = vadd.f32 %v614, %v1602
  %v1606 = vxor.u32 %v1604, 2147483648
  %v1607 = vxor.u32 %v1605, 2147483648
  %v1608 = vmul.f32 %v1606, 1.442695
  %v1609 = vpow.pop %v1608
  %v1610 = vmul.f32 %v1607, 1.442695
  %v1611 = vpow.pop %v1610
  %v1612 = vadd.f32 %v1609, 1.0
  %v1613 = vadd.f32 %v1611, 1.0
  %v1614 = vrcp.pop %v1612
  %v1615 = vmul.f32 1.0, %v1614
  %v1616 = vrcp.pop %v1613
  %v1617 = vmul.f32 1.0, %v1616
  %v1618 = vtanh.pop %v1604
  %v1619 = vtanh.pop %v1605
  %1622 = vrot.lane.b32.xlu0 %v1618, 64
  %v1623 = vpop.permute.xlu0 %1622
  %1624 = vrot.lane.b32.xlu0 %v1619, 64
  %v1625 = vpop.permute.xlu0 %1624
  %v1628 = vmul.f32 %v1615, %v1623
  %v1629 = vmul.f32 %v1617, %v1625
  %1632 = vrot.lane.b32.xlu0 %v1501, 32
  %v1633 = vpop.permute.xlu0 %1632
  %1634 = vrot.lane.b32.xlu0 %v1502, 32
  %v1635 = vpop.permute.xlu0 %1634
  %v1638 = vmul.f32 %v1615, %v1633
  %v1639 = vmul.f32 %v1617, %v1635
  %1642 = vrot.lane.b32.xlu0 %v1638, 96
  %v1643 = vpop.permute.xlu0 %1642
  %1644 = vrot.lane.b32.xlu0 %v1639, 96
  %v1645 = vpop.permute.xlu0 %1644
  %v1648 = vadd.f32 %v1628, %v1643
  %v1649 = vadd.f32 %v1629, %v1645
  %v1650 = vtanh.pop %v1648
  %v1651 = vtanh.pop %v1649
  %1654 = vrot.lane.b32.xlu0 %v1650, 96
  %v1655 = vpop.permute.xlu0 %1654
  %1656 = vrot.lane.b32.xlu0 %v1651, 96
  %v1657 = vpop.permute.xlu0 %1656
  %v1660 = vmul.f32 %v1615, %v1655
  %v1661 = vmul.f32 %v1617, %v1657
  %1663 = vrot.lane.b32.xlu0 %v1660, 32
  %v1664 = vpop.permute.xlu0 %1663
  %1666 = vst.msk [vmem:[#allocation2 + $0x30] sm:$0xff] %vm160, %v1664
  %1668 = vrot.lane.b32.xlu0 %v1661, 32
  %v1669 = vpop.permute.xlu0 %1668
  %1671 = vst.msk [vmem:[#allocation2 + $0x48] sm:$0xff] %vm160, %v1669
  %v1672 = vsel %vm160, %v1664, 0
  %v1674 = vsel %vm160, %v1669, 0
  %1676 = vmatprep.subr.mxu0 %v128
  %1677 = vmatpush1.msra.mxu0 %v126
  %1678 = vmatprep.subr.mxu0 %v134
  %1679 = vmatpush1.msra.mxu0 %v132
  %1680 = vmatprep.subr.mxu0 %v140
  %1681 = vmatpush1.msra.mxu0 %v138
  %1682 = vmatprep.subr.mxu0 %v146
  %1683 = vmatpush1.msra.mxu0 %v144
  %1684 = vmatprep.subr.mxu0 0.0
  %1685 = vmatpush1.msra.mxu0 0.0
  %1686 = vmatprep.subr.mxu0 0.0
  %1687 = vmatpush1.msra.mxu0 0.0
  %1688 = vmatprep.subr.mxu0 0.0
  %1689 = vmatpush1.msra.mxu0 0.0
  %1690 = vmatprep.subr.mxu0 0.0
  %1691 = vmatpush1.msra.mxu0 0.0
  %1692 = vmatprep.subr.mxu0 0.0
  %1693 = vmatpush1.msra.mxu0 0.0
  %1694 = vmatprep.subr.mxu0 0.0
  %1695 = vmatpush1.msra.mxu0 0.0
  %1696 = vmatprep.subr.mxu0 0.0
  %1697 = vmatpush1.msra.mxu0 0.0
  %1698 = vmatprep.subr.mxu0 0.0
  %1699 = vmatpush1.msra.mxu0 0.0
  %1700 = vmatprep.subr.mxu0 0.0
  %1701 = vmatpush1.msra.mxu0 0.0
  %1702 = vmatprep.subr.mxu0 0.0
  %1703 = vmatpush1.msra.mxu0 0.0
  %1704 = vmatprep.subr.mxu0 0.0
  %1705 = vmatpush1.msra.mxu0 0.0
  %1706 = vmatprep.subr.mxu0 0.0
  %1707 = vmatpush1.msra.mxu0 0.0
  %1708 = vmatprep.subr.mxu0 0.0
  %1709 = vmatpush1.msra.mxu0 0.0
  %1710 = vmatprep.subr.mxu0 0.0
  %1711 = vmatpush1.msra.mxu0 0.0
  %1712 = vmatprep.subr.mxu0 0.0
  %1713 = vmatpush1.msra.mxu0 0.0
  %1714 = vmatprep.subr.mxu0 0.0
  %1715 = vmatpush1.msra.mxu0 0.0
  %1716 = vmatprep.subr.mxu0 0.0
  %1717 = vmatpush1.msra.mxu0 0.0
  %1718 = vmatprep.subr.mxu0 0.0
  %1719 = vmatpush1.msra.mxu0 0.0
  %1720 = vmatprep.subr.mxu0 0.0
  %1721 = vmatpush1.msra.mxu0 0.0
  %1722 = vmatprep.subr.mxu0 0.0
  %1723 = vmatpush1.msra.mxu0 0.0
  %1724 = vmatprep.subr.mxu0 0.0
  %1725 = vmatpush1.msra.mxu0 0.0
  %1726 = vmatprep.subr.mxu0 0.0
  %1727 = vmatpush1.msra.mxu0 0.0
  %1728 = vmatprep.subr.mxu0 0.0
  %1729 = vmatpush1.msra.mxu0 0.0
  %1730 = vmatprep.subr.mxu0 0.0
  %1731 = vmatpush1.msra.mxu0 0.0
  %1732 = vmatprep.subr.mxu0 0.0
  %1733 = vmatpush1.msra.mxu0 0.0
  %1734 = vmatprep.subr.mxu0 0.0
  %1735 = vmatpush1.msra.mxu0 0.0
  %1736 = vmatprep.subr.mxu0 0.0
  %1737 = vmatpush1.msra.mxu0 0.0
  %1738 = vmatprep.subr.mxu0 0.0
  %1739 = vmatpush1.msra.mxu0 0.0
  %1740 = vmatprep.mubr.f32.mxu0 0.0
  %1741 = vmatmul.mubr.f32.gmra.mrb[0].mxu0 %v1672
  %v1742 = vpop.f32.mrb[0].mxu0
  %v1743 = vadd.f32 0.0, %v1742
  %v1744 = vpop.f32.mrb[0].mxu0
  %1745 = vmatprep.mubr.f32.mxu0 0.0
  %1746 = vmatmul.mubr.f32.gmra.mrb[0].mxu0 %v1674
  %v1747 = vpop.f32.mrb[0].mxu0
  %v1748 = vpop.f32.mrb[0].mxu0
  %v1749 = vadd.f32 0.0, %v1748
  %1750 = vdwg.mxu0
  %v1751 = vadd.f32 %v648, %v1743
  %v1752 = vadd.f32 %v608, %v1749
  %v1753 = vxor.u32 %v1751, 2147483648
  %v1754 = vxor.u32 %v1752, 2147483648
  %v1755 = vmul.f32 %v1753, 1.442695
  %v1756 = vpow.pop %v1755
  %v1757 = vmul.f32 %v1754, 1.442695
  %v1758 = vpow.pop %v1757
  %v1759 = vadd.f32 %v1756, 1.0
  %v1760 = vadd.f32 %v1758, 1.0
  %v1761 = vrcp.pop %v1759
  %v1762 = vmul.f32 1.0, %v1761
  %v1763 = vrcp.pop %v1760
  %v1764 = vmul.f32 1.0, %v1763
  %v1765 = vtanh.pop %v1751
  %v1766 = vtanh.pop %v1752
  %1769 = vrot.lane.b32.xlu0 %v1765, 64
  %v1770 = vpop.permute.xlu0 %1769
  %1771 = vrot.lane.b32.xlu0 %v1766, 64
  %v1772 = vpop.permute.xlu0 %1771
  %v1775 = vmul.f32 %v1762, %v1770
  %v1776 = vmul.f32 %v1764, %v1772
  %1779 = vrot.lane.b32.xlu0 %v1648, 32
  %v1780 = vpop.permute.xlu0 %1779
  %1781 = vrot.lane.b32.xlu0 %v1649, 32
  %v1782 = vpop.permute.xlu0 %1781
  %v1785 = vmul.f32 %v1762, %v1780
  %v1786 = vmul.f32 %v1764, %v1782
  %1789 = vrot.lane.b32.xlu0 %v1785, 96
  %v1790 = vpop.permute.xlu0 %1789
  %1791 = vrot.lane.b32.xlu0 %v1786, 96
  %v1792 = vpop.permute.xlu0 %1791
  %v1795 = vadd.f32 %v1775, %v1790
  %v1796 = vadd.f32 %v1776, %v1792
  %v1797 = vtanh.pop %v1795
  %v1798 = vtanh.pop %v1796
  %1801 = vrot.lane.b32.xlu0 %v1797, 96
  %v1802 = vpop.permute.xlu0 %1801
  %1803 = vrot.lane.b32.xlu0 %v1798, 96
  %v1804 = vpop.permute.xlu0 %1803
  %v1807 = vmul.f32 %v1762, %v1802
  %v1808 = vmul.f32 %v1764, %v1804
  %1810 = vrot.lane.b32.xlu0 %v1807, 32
  %v1811 = vpop.permute.xlu0 %1810
  %1813 = vst.msk [vmem:[#allocation2 + $0x38] sm:$0xff] %vm160, %v1811
  %1815 = vrot.lane.b32.xlu0 %v1808, 32
  %v1816 = vpop.permute.xlu0 %1815
  %1818 = vst.msk [vmem:[#allocation2 + $0x40] sm:$0xff] %vm160, %v1816
  %v1819 = vld [vmem:[#allocation2] sm:$0xff]
  %v1820 = vld [vmem:[#allocation2 + $0x8] sm:$0xff]
  %v1821 = vld [vmem:[#allocation2 + $0x10] sm:$0xff]
  %v1822 = vld [vmem:[#allocation2 + $0x18] sm:$0xff]
  %v1823 = vld [vmem:[#allocation2 + $0x20] sm:$0xff]
  %v1824 = vld [vmem:[#allocation2 + $0x28] sm:$0xff]
  %v1825 = vld [vmem:[#allocation2 + $0x30] sm:$0xff]
  %v1826 = vld [vmem:[#allocation2 + $0x38] sm:$0xff]
  %v1827 = vld [vmem:[%s6] sm:$0x1]
  %v1829 = vlaneseq
  %v1830 = vshrl.u32 %v1829, 7
  %v1831 = vsub.s32 0, %v1830
  %v1832 = vrot.slane %v1827, %v1831
  %v1835 = vsel %vm160, %v1819, 0
  %v1838 = vsel %vm160, %v1820, 0
  %v1841 = vsel %vm160, %v1821, 0
  %v1844 = vsel %vm160, %v1822, 0
  %v1847 = vsel %vm160, %v1823, 0
  %v1850 = vsel %vm160, %v1824, 0
  %v1853 = vsel %vm160, %v1825, 0
  %v1856 = vsel %vm160, %v1826, 0
  %1858 = vmatprep.subr.mxu0 0.0
  %1859 = vmatpush1.msra.mxu0 %v244
  %1860 = vmatprep.subr.mxu0 0.0
  %1861 = vmatpush1.msra.mxu0 %v249
  %1862 = vmatprep.subr.mxu0 0.0
  %1863 = vmatpush1.msra.mxu0 %v254
  %1864 = vmatprep.subr.mxu0 0.0
  %1865 = vmatpush1.msra.mxu0 %v259
  %1866 = vmatprep.subr.mxu0 0.0
  %1867 = vmatpush1.msra.mxu0 0.0
  %1868 = vmatprep.subr.mxu0 0.0
  %1869 = vmatpush1.msra.mxu0 0.0
  %1870 = vmatprep.subr.mxu0 0.0
  %1871 = vmatpush1.msra.mxu0 0.0
  %1872 = vmatprep.subr.mxu0 0.0
  %1873 = vmatpush1.msra.mxu0 0.0
  %1874 = vmatprep.subr.mxu0 0.0
  %1875 = vmatpush1.msra.mxu0 0.0
  %1876 = vmatprep.subr.mxu0 0.0
  %1877 = vmatpush1.msra.mxu0 0.0
  %1878 = vmatprep.subr.mxu0 0.0
  %1879 = vmatpush1.msra.mxu0 0.0
  %1880 = vmatprep.subr.mxu0 0.0
  %1881 = vmatpush1.msra.mxu0 0.0
  %1882 = vmatprep.subr.mxu0 0.0
  %1883 = vmatpush1.msra.mxu0 0.0
  %1884 = vmatprep.subr.mxu0 0.0
  %1885 = vmatpush1.msra.mxu0 0.0
  %1886 = vmatprep.subr.mxu0 0.0
  %1887 = vmatpush1.msra.mxu0 0.0
  %1888 = vmatprep.subr.mxu0 0.0
  %1889 = vmatpush1.msra.mxu0 0.0
  %1890 = vmatprep.subr.mxu0 0.0
  %1891 = vmatpush1.msra.mxu0 0.0
  %1892 = vmatprep.subr.mxu0 0.0
  %1893 = vmatpush1.msra.mxu0 0.0
  %1894 = vmatprep.subr.mxu0 0.0
  %1895 = vmatpush1.msra.mxu0 0.0
  %1896 = vmatprep.subr.mxu0 0.0
  %1897 = vmatpush1.msra.mxu0 0.0
  %1898 = vmatprep.subr.mxu0 0.0
  %1899 = vmatpush1.msra.mxu0 0.0
  %1900 = vmatprep.subr.mxu0 0.0
  %1901 = vmatpush1.msra.mxu0 0.0
  %1902 = vmatprep.subr.mxu0 0.0
  %1903 = vmatpush1.msra.mxu0 0.0
  %1904 = vmatprep.subr.mxu0 0.0
  %1905 = vmatpush1.msra.mxu0 0.0
  %1906 = vmatprep.subr.mxu0 0.0
  %1907 = vmatpush1.msra.mxu0 0.0
  %1908 = vmatprep.subr.mxu0 0.0
  %1909 = vmatpush1.msra.mxu0 0.0
  %1910 = vmatprep.subr.mxu0 0.0
  %1911 = vmatpush1.msra.mxu0 0.0
  %1912 = vmatprep.subr.mxu0 0.0
  %1913 = vmatpush1.msra.mxu0 0.0
  %1914 = vmatprep.subr.mxu0 0.0
  %1915 = vmatpush1.msra.mxu0 0.0
  %1916 = vmatprep.subr.mxu0 0.0
  %1917 = vmatpush1.msra.mxu0 0.0
  %1918 = vmatprep.subr.mxu0 0.0
  %1919 = vmatpush1.msra.mxu0 0.0
  %1920 = vmatprep.subr.mxu0 0.0
  %1921 = vmatpush1.msra.mxu0 0.0
  %1922 = vmatprep.mubr.f32.mxu0 0.0
  %1923 = vmatmul.mubr.f32.gmra.mrb[0].mxu0 %v1835
  %v1924 = vpop.f32.mrb[0].mxu0
  %v1925 = vadd.f32 %v1832, %v1924
  %v1926 = vpop.f32.mrb[0].mxu0
  %1927 = vmatprep.mubr.f32.mxu0 0.0
  %1928 = vmatmul.mubr.f32.gmra.mrb[0].mxu0 %v1838
  %v1929 = vpop.f32.mrb[0].mxu0
  %v1930 = vadd.f32 %v1832, %v1929
  %v1931 = vpop.f32.mrb[0].mxu0
  %1932 = vmatprep.mubr.f32.mxu0 0.0
  %1933 = vmatmul.mubr.f32.gmra.mrb[0].mxu0 %v1841
  %v1934 = vpop.f32.mrb[0].mxu0
  %v1935 = vadd.f32 %v1832, %v1934
  %v1936 = vpop.f32.mrb[0].mxu0
  %1937 = vmatprep.mubr.f32.mxu0 0.0
  %1938 = vmatmul.mubr.f32.gmra.mrb[0].mxu0 %v1844
  %v1939 = vpop.f32.mrb[0].mxu0
  %v1940 = vadd.f32 %v1832, %v1939
  %v1941 = vpop.f32.mrb[0].mxu0
  %1942 = vmatprep.mubr.f32.mxu0 0.0
  %1943 = vmatmul.mubr.f32.gmra.mrb[0].mxu0 %v1847
  %v1944 = vpop.f32.mrb[0].mxu0
  %v1945 = vadd.f32 %v1832, %v1944
  %v1946 = vpop.f32.mrb[0].mxu0
  %1947 = vmatprep.mubr.f32.mxu0 0.0
  %1948 = vmatmul.mubr.f32.gmra.mrb[0].mxu0 %v1850
  %v1949 = vpop.f32.mrb[0].mxu0
  %v1950 = vadd.f32 %v1832, %v1949
  %v1951 = vpop.f32.mrb[0].mxu0
  %1952 = vmatprep.mubr.f32.mxu0 0.0
  %1953 = vmatmul.mubr.f32.gmra.mrb[0].mxu0 %v1853
  %v1954 = vpop.f32.mrb[0].mxu0
  %v1955 = vadd.f32 %v1832, %v1954
  %v1956 = vpop.f32.mrb[0].mxu0
  %1957 = vmatprep.mubr.f32.mxu0 0.0
  %1958 = vmatmul.mubr.f32.gmra.mrb[0].mxu0 %v1856
  %v1959 = vpop.f32.mrb[0].mxu0
  %v1960 = vadd.f32 %v1832, %v1959
  %v1961 = vpop.f32.mrb[0].mxu0
  %1962 = vdwg.mxu0
  %1963 = vst [vmem:[%s7] sm:$0xff] %v1925
  %1964 = vst [vmem:[%s7 + $0x8] sm:$0xff] %v1930
  %1965 = vst [vmem:[%s7 + $0x10] sm:$0xff] %v1935
  %1966 = vst [vmem:[%s7 + $0x18] sm:$0xff] %v1940
  %1967 = vst [vmem:[%s7 + $0x20] sm:$0xff] %v1945
  %1968 = vst [vmem:[%s7 + $0x28] sm:$0xff] %v1950
  %1969 = vst [vmem:[%s7 + $0x30] sm:$0xff] %v1955
  %1970 = vst [vmem:[%s7 + $0x38] sm:$0xff] %v1960
  %v1971 = vld [vmem:[#allocation2 + $0x40] sm:$0xff]
  %v1972 = vld [vmem:[#allocation2 + $0x48] sm:$0xff]
  %v1973 = vld [vmem:[#allocation2 + $0x50] sm:$0xff]
  %v1974 = vld [vmem:[#allocation2 + $0x58] sm:$0xff]
  %v1975 = vld [vmem:[#allocation2 + $0x60] sm:$0xff]
  %v1976 = vld [vmem:[#allocation2 + $0x68] sm:$0xff]
  %v1977 = vld [vmem:[#allocation2 + $0x70] sm:$0xff]
  %v1978 = vld [vmem:[#allocation2 + $0x78] sm:$0xff]
  %v1979 = vld [vmem:[%s6] sm:$0x1]
  %v1981 = vlaneseq
  %v1982 = vshrl.u32 %v1981, 7
  %v1983 = vsub.s32 0, %v1982
  %v1984 = vrot.slane %v1979, %v1983
  %v1987 = vsel %vm160, %v1971, 0
  %v1990 = vsel %vm160, %v1972, 0
  %v1993 = vsel %vm160, %v1973, 0
  %v1996 = vsel %vm160, %v1974, 0
  %v1999 = vsel %vm160, %v1975, 0
  %v2002 = vsel %vm160, %v1976, 0
  %v2005 = vsel %vm160, %v1977, 0
  %v2008 = vsel %vm160, %v1978, 0
  %2010 = vmatprep.subr.mxu0 0.0
  %2011 = vmatpush1.msra.mxu0 %v264
  %2012 = vmatprep.subr.mxu0 0.0
  %2013 = vmatpush1.msra.mxu0 %v269
  %2014 = vmatprep.subr.mxu0 0.0
  %2015 = vmatpush1.msra.mxu0 %v274
  %2016 = vmatprep.subr.mxu0 0.0
  %2017 = vmatpush1.msra.mxu0 %v279
  %2018 = vmatprep.subr.mxu0 0.0
  %2019 = vmatpush1.msra.mxu0 0.0
  %2020 = vmatprep.subr.mxu0 0.0
  %2021 = vmatpush1.msra.mxu0 0.0
  %2022 = vmatprep.subr.mxu0 0.0
  %2023 = vmatpush1.msra.mxu0 0.0
  %2024 = vmatprep.subr.mxu0 0.0
  %2025 = vmatpush1.msra.mxu0 0.0
  %2026 = vmatprep.subr.mxu0 0.0
  %2027 = vmatpush1.msra.mxu0 0.0
  %2028 = vmatprep.subr.mxu0 0.0
  %2029 = vmatpush1.msra.mxu0 0.0
  %2030 = vmatprep.subr.mxu0 0.0
  %2031 = vmatpush1.msra.mxu0 0.0
  %2032 = vmatprep.subr.mxu0 0.0
  %2033 = vmatpush1.msra.mxu0 0.0
  %2034 = vmatprep.subr.mxu0 0.0
  %2035 = vmatpush1.msra.mxu0 0.0
  %2036 = vmatprep.subr.mxu0 0.0
  %2037 = vmatpush1.msra.mxu0 0.0
  %2038 = vmatprep.subr.mxu0 0.0
  %2039 = vmatpush1.msra.mxu0 0.0
  %2040 = vmatprep.subr.mxu0 0.0
  %2041 = vmatpush1.msra.mxu0 0.0
  %2042 = vmatprep.subr.mxu0 0.0
  %2043 = vmatpush1.msra.mxu0 0.0
  %2044 = vmatprep.subr.mxu0 0.0
  %2045 = vmatpush1.msra.mxu0 0.0
  %2046 = vmatprep.subr.mxu0 0.0
  %2047 = vmatpush1.msra.mxu0 0.0
  %2048 = vmatprep.subr.mxu0 0.0
  %2049 = vmatpush1.msra.mxu0 0.0
  %2050 = vmatprep.subr.mxu0 0.0
  %2051 = vmatpush1.msra.mxu0 0.0
  %2052 = vmatprep.subr.mxu0 0.0
  %2053 = vmatpush1.msra.mxu0 0.0
  %2054 = vmatprep.subr.mxu0 0.0
  %2055 = vmatpush1.msra.mxu0 0.0
  %2056 = vmatprep.subr.mxu0 0.0
  %2057 = vmatpush1.msra.mxu0 0.0
  %2058 = vmatprep.subr.mxu0 0.0
  %2059 = vmatpush1.msra.mxu0 0.0
  %2060 = vmatprep.subr.mxu0 0.0
  %2061 = vmatpush1.msra.mxu0 0.0
  %2062 = vmatprep.subr.mxu0 0.0
  %2063 = vmatpush1.msra.mxu0 0.0
  %2064 = vmatprep.subr.mxu0 0.0
  %2065 = vmatpush1.msra.mxu0 0.0
  %2066 = vmatprep.subr.mxu0 0.0
  %2067 = vmatpush1.msra.mxu0 0.0
  %2068 = vmatprep.subr.mxu0 0.0
  %2069 = vmatpush1.msra.mxu0 0.0
  %2070 = vmatprep.subr.mxu0 0.0
  %2071 = vmatpush1.msra.mxu0 0.0
  %2072 = vmatprep.subr.mxu0 0.0
  %2073 = vmatpush1.msra.mxu0 0.0
  %2074 = vmatprep.mubr.f32.mxu0 0.0
  %2075 = vmatmul.mubr.f32.gmra.mrb[0].mxu0 %v1987
  %v2076 = vpop.f32.mrb[0].mxu0
  %v2077 = vadd.f32 %v1984, %v2076
  %v2078 = vpop.f32.mrb[0].mxu0
  %2079 = vmatprep.mubr.f32.mxu0 0.0
  %2080 = vmatmul.mubr.f32.gmra.mrb[0].mxu0 %v1990
  %v2081 = vpop.f32.mrb[0].mxu0
  %v2082 = vadd.f32 %v1984, %v2081
  %v2083 = vpop.f32.mrb[0].mxu0
  %2084 = vmatprep.mubr.f32.mxu0 0.0
  %2085 = vmatmul.mubr.f32.gmra.mrb[0].mxu0 %v1993
  %v2086 = vpop.f32.mrb[0].mxu0
  %v2087 = vadd.f32 %v1984, %v2086
  %v2088 = vpop.f32.mrb[0].mxu0
  %2089 = vmatprep.mubr.f32.mxu0 0.0
  %2090 = vmatmul.mubr.f32.gmra.mrb[0].mxu0 %v1996
  %v2091 = vpop.f32.mrb[0].mxu0
  %v2092 = vadd.f32 %v1984, %v2091
  %v2093 = vpop.f32.mrb[0].mxu0
  %2094 = vmatprep.mubr.f32.mxu0 0.0
  %2095 = vmatmul.mubr.f32.gmra.mrb[0].mxu0 %v1999
  %v2096 = vpop.f32.mrb[0].mxu0
  %v2097 = vadd.f32 %v1984, %v2096
  %v2098 = vpop.f32.mrb[0].mxu0
  %2099 = vmatprep.mubr.f32.mxu0 0.0
  %2100 = vmatmul.mubr.f32.gmra.mrb[0].mxu0 %v2002
  %v2101 = vpop.f32.mrb[0].mxu0
  %v2102 = vadd.f32 %v1984, %v2101
  %v2103 = vpop.f32.mrb[0].mxu0
  %2104 = vmatprep.mubr.f32.mxu0 0.0
  %2105 = vmatmul.mubr.f32.gmra.mrb[0].mxu0 %v2005
  %v2106 = vpop.f32.mrb[0].mxu0
  %v2107 = vadd.f32 %v1984, %v2106
  %v2108 = vpop.f32.mrb[0].mxu0
  %2109 = vmatprep.mubr.f32.mxu0 0.0
  %2110 = vmatmul.mubr.f32.gmra.mrb[0].mxu0 %v2008
  %v2111 = vpop.f32.mrb[0].mxu0
  %v2112 = vadd.f32 %v1984, %v2111
  %v2113 = vpop.f32.mrb[0].mxu0
  %2114 = vdwg.mxu0
  %2115 = vst [vmem:[%s7 + $0x40] sm:$0xff] %v2077
  %2116 = vst [vmem:[%s7 + $0x48] sm:$0xff] %v2082
  %2117 = vst [vmem:[%s7 + $0x50] sm:$0xff] %v2087
  %2118 = vst [vmem:[%s7 + $0x58] sm:$0xff] %v2092
  %2119 = vst [vmem:[%s7 + $0x60] sm:$0xff] %v2097
  %2120 = vst [vmem:[%s7 + $0x68] sm:$0xff] %v2102
  %2121 = vst [vmem:[%s7 + $0x70] sm:$0xff] %v2107
  %2122 = vst [vmem:[%s7 + $0x78] sm:$0xff] %v2112
  // Predicated region
  $region30: #{model_forward.1} parent=0 // pred_check
    _
  $region31: #{model_forward.1} parent=0 // pred_check_branch
    %2124 = sbr.rel (0) target = $region33
  $region32: #{model_forward.1} parent=0 // pred_region
    _
  $region33: #{model_forward.1} parent=0 // pred_fallthru
    _
  // Predicated region
  $region34: #{model_forward.1} parent=0 // pred_check
    _
  $region35: #{model_forward.1} parent=0 // pred_check_branch
    %2126 = sbr.rel (0) target = $region37
  $region36: #{model_forward.1} parent=0 // pred_region
    _
  $region37: #{model_forward.1} parent=0 // pred_fallthru
    _

</llo_original>
